<compile_context>
chip_gen: v6e
topology: v6e:2x2x1
jax: 0.10.0
libtpu: 0.0.40
codegen_flags: <defaults>
</compile_context>

<pallas_src>
import math

import jax
import jax.numpy as jnp
from jax import lax
from jax.experimental import pallas as pl
from jax.experimental.pallas import tpu as pltpu

# ---- model dims (small, consistent with a tiny encoder layer) ----
T = 8        # sequence length
B = 2        # batch
C = 32       # embed_dim
H = 4        # num attention heads
DH = C // H  # head dim
F = 64       # ffn hidden dim
N = B * T    # flattened token count
EPS = 1e-5
NEG_INF = -1e9

VEC_ROWS = 8            # bias/gamma/beta slab rows
W_COLS = max(C, F)      # weight slab lane width (64)
W_ROWS = 2 * C + F      # weight slab rows: wo (C) | w1 (C) | w2 (F)


def _layernorm(y, gamma, beta):
    mean = jnp.mean(y, axis=-1, keepdims=True)
    var = jnp.mean((y - mean) ** 2, axis=-1, keepdims=True)
    return (y - mean) * lax.rsqrt(var + EPS) * gamma + beta


# -------------------- fused kernel: attention + LN + FFN + LN --------------------
def encoder_layer_kernel(x_ref, bias_ref, wqkv_ref, wslab_ref, vec_ref, o_ref):
    x_aug = x_ref[...]                       # (N, C+1); last column is the constant 1.0
    x = x_aug[:, :C]                         # residual — leading-lane slice (no rotate)
    bias = bias_ref[...]                     # (N, N) additive attention bias (wrapper-built)

    # ---- attention: static unroll over heads, no lane slicing / concats ----
    attn = None
    for h in range(H):
        # per-head (C+1, DH) weights; QKV bias folded in as last row, 1/sqrt(DH) folded into Q
        q = jnp.dot(x_aug, wqkv_ref[h], preferred_element_type=jnp.float32)          # (N, DH)
        k = jnp.dot(x_aug, wqkv_ref[H + h], preferred_element_type=jnp.float32)      # (N, DH)
        v = jnp.dot(x_aug, wqkv_ref[2 * H + h], preferred_element_type=jnp.float32)  # (N, DH)
        # contract last dims of q and k (flash-attention reference pattern)
        s = lax.dot_general(q, k, (((1,), (1,)), ((), ())),
                            preferred_element_type=jnp.float32) + bias               # (N, N)
        s = s - jnp.max(s, axis=-1, keepdims=True)
        p = jnp.exp(s)
        p = p / jnp.sum(p, axis=-1, keepdims=True)     # exact divide (no approx reciprocal)
        ctx = jnp.dot(p, v, preferred_element_type=jnp.float32)                      # (N, DH)
        # per-head output projection (accumulate instead of lane concat + one Wo matmul)
        wo_h = wslab_ref[h * DH:(h + 1) * DH, :C]                                    # (DH, C)
        part = jnp.dot(ctx, wo_h, preferred_element_type=jnp.float32)                # (N, C)
        attn = part if attn is None else attn + part

    # ---- bias / LN vectors from the packed slab (static leading-lane ref slices) ----
    bo  = vec_ref[0:1, :C]
    g1  = vec_ref[1:2, :C]
    be1 = vec_ref[2:3, :C]
    b1  = vec_ref[3:4, :F]
    b2  = vec_ref[4:5, :C]
    g2  = vec_ref[5:6, :C]
    be2 = vec_ref[6:7, :C]

    # ---- residual + LN ----
    y = _layernorm(x + attn + bo, g1, be1)

    # ---- feed-forward + residual + LN ----
    w1 = wslab_ref[C:2 * C, :F]              # (C, F)
    w2 = wslab_ref[2 * C:2 * C + F, :C]      # (F, C)
    hdn = jnp.maximum(jnp.dot(y, w1, preferred_element_type=jnp.float32) + b1, 0.0)
    z = jnp.dot(hdn, w2, preferred_element_type=jnp.float32) + b2
    # NOTE: output kept (N, C); when C >= 128 present a lane-dense out_spec instead.
    o_ref[...] = _layernorm(y + z, g2, be2).astype(o_ref.dtype)


# -------------------- wrapper-side packing (free XLA work, runs once per call) --------------------
def _pack_params(params):
    scale = 1.0 / math.sqrt(DH)

    def head_major(w, b, s):
        # (C, C) weight + (1, C) bias -> (H, C+1, DH): bias as extra input row, head-major cols
        w_aug = jnp.concatenate([w * s, b * s], axis=0)            # (C+1, C)
        return w_aug.reshape(C + 1, H, DH).transpose(1, 0, 2)      # (H, C+1, DH)

    wqkv = jnp.concatenate(
        [head_major(params["wq"], params["bq"], scale),            # 1/sqrt(DH) folded into Q
         head_major(params["wk"], params["bk"], 1.0),
         head_major(params["wv"], params["bv"], 1.0)], axis=0)     # (3H, C+1, DH)

    wslab = jnp.zeros((W_ROWS, W_COLS), jnp.float32)               # wo | w1 | w2 in one slab
    wslab = wslab.at[0:C, 0:C].set(params["wo"])
    wslab = wslab.at[C:2 * C, 0:F].set(params["w1"])
    wslab = wslab.at[2 * C:2 * C + F, 0:C].set(params["w2"])

    vec = jnp.zeros((VEC_ROWS, W_COLS), jnp.float32)               # all (1, X) vectors in one slab
    vec = vec.at[0, 0:C].set(params["bo"][0])
    vec = vec.at[1, 0:C].set(params["ln1_g"][0])
    vec = vec.at[2, 0:C].set(params["ln1_b"][0])
    vec = vec.at[3, 0:F].set(params["b1"][0])
    vec = vec.at[4, 0:C].set(params["b2"][0])
    vec = vec.at[5, 0:C].set(params["ln2_g"][0])
    vec = vec.at[6, 0:C].set(params["ln2_b"][0])
    return wqkv, wslab, vec


def _build_bias(encoder_padding_mask, attn_mask):
    """Full (N, N) additive bias: block-diagonal over batch + key padding + attn_mask."""
    bid = jnp.repeat(jnp.arange(B, dtype=jnp.int32), T)             # (N,) batch id per token
    same = bid[:, None] == bid[None, :]                             # (N, N)
    bias = jnp.where(same, 0.0, NEG_INF).astype(jnp.float32)
    pad = encoder_padding_mask.reshape(N)                           # True = pad (key)
    bias = bias + jnp.where(pad[None, :], jnp.float32(NEG_INF), jnp.float32(0.0))
    if attn_mask is not None:
        am = jnp.tile(attn_mask.astype(jnp.float32), (B, B))        # same (T, T) mask per batch
        bias = bias + jnp.where(same, am, 0.0)                      # only inside own batch block
    return bias


def _full(shape):
    return pl.BlockSpec(shape, lambda i: (0,) * len(shape))


@jax.jit
def transformer_encoder_layer(x_tbc, encoder_padding_mask, params, attn_mask=None):
    """x_tbc: (T, B, C) f32; encoder_padding_mask: (B, T) bool (True = pad);
    attn_mask: optional (T, T) additive float mask."""
    x_flat = jnp.transpose(x_tbc, (1, 0, 2)).reshape(N, C)                        # (B*T, C)
    x_aug = jnp.concatenate([x_flat, jnp.ones((N, 1), jnp.float32)], axis=1)      # (N, C+1)
    bias = _build_bias(encoder_padding_mask, attn_mask)                           # (N, N)
    wqkv, wslab, vec = _pack_params(params)

    # TODO(synk): at real model sizes (C>=512, F>=2048, long T): store weights bf16 and cast
    # activations in-kernel; add a leading "parallel" query-block axis so v7x's 2 TCs share the
    # work; add a K-dim grid axis + f32 VMEM accumulator for fc1/fc2 and re-derive tile sizes
    # for v7x's 64 MiB VMEM (raise vmem_limit_bytes if needed).
    out_flat = pl.pallas_call(
        encoder_layer_kernel,
        out_shape=jax.ShapeDtypeStruct((N, C), jnp.float32),
        grid_spec=pltpu.PrefetchScalarGridSpec(
            num_scalar_prefetch=0, grid=(1,),
            in_specs=[_full((N, C + 1)),
                      _full((N, N)),
                      _full((3 * H, C + 1, DH)),
                      _full((W_ROWS, W_COLS)),
                      _full((VEC_ROWS, W_COLS))],
            out_specs=_full((N, C))),
        compiler_params=pltpu.CompilerParams(dimension_semantics=("arbitrary",)),
    )(x_aug, bias, wqkv, wslab, vec)
    return jnp.transpose(out_flat.reshape(B, T, C), (1, 0, 2))       # back to (T, B, C)


# -------------------- pure-JAX reference (for sanity check) --------------------
def reference(x_tbc, encoder_padding_mask, params, attn_mask=None):
    x = jnp.transpose(x_tbc, (1, 0, 2))                              # (B, T, C)
    bias = jnp.where(encoder_padding_mask[:, None, :], NEG_INF, 0.0)
    if attn_mask is not None:
        bias = bias + attn_mask[None, :, :]
    q = x @ params["wq"] + params["bq"]
    k = x @ params["wk"] + params["bk"]
    v = x @ params["wv"] + params["bv"]

    def split(t):  # (B,T,C) -> (B,H,T,DH)
        return t.reshape(B, T, H, DH).transpose(0, 2, 1, 3)

    qh, kh, vh = split(q), split(k), split(v)
    s = jnp.einsum("bhqd,bhkd->bhqk", qh, kh) / math.sqrt(DH) + bias[:, None, :, :]
    p = jax.nn.softmax(s, axis=-1)
    ctx = jnp.einsum("bhqk,bhkd->bhqd", p, vh).transpose(0, 2, 1, 3).reshape(B, T, C)
    y = x + ctx @ params["wo"] + params["bo"]
    y = _layernorm(y, params["ln1_g"], params["ln1_b"])
    h = jnp.maximum(y @ params["w1"] + params["b1"], 0.0)
    z = y + h @ params["w2"] + params["b2"]
    z = _layernorm(z, params["ln2_g"], params["ln2_b"])
    return jnp.transpose(z, (1, 0, 2))


# -------------------- deterministic parameter init --------------------
def init_params(key):
    ks = jax.random.split(key, 16)
    s = 0.1
    return {
        "wq": s * jax.random.normal(ks[0], (C, C), jnp.float32),
        "wk": s * jax.random.normal(ks[1], (C, C), jnp.float32),
        "wv": s * jax.random.normal(ks[2], (C, C), jnp.float32),
        "wo": s * jax.random.normal(ks[3], (C, C), jnp.float32),
        # non-zero projection biases so the bias-row folding is actually exercised
        "bq": 0.02 * jax.random.normal(ks[4], (1, C), jnp.float32),
        "bk": 0.02 * jax.random.normal(ks[5], (1, C), jnp.float32),
        "bv": 0.02 * jax.random.normal(ks[6], (1, C), jnp.float32),
        "bo": 0.02 * jax.random.normal(ks[7], (1, C), jnp.float32),
        # non-trivial LN params so vector-slab indexing is exercised
        "ln1_g": 1.0 + 0.1 * jax.random.normal(ks[8], (1, C), jnp.float32),
        "ln1_b": 0.05 * jax.random.normal(ks[9], (1, C), jnp.float32),
        "w1": s * jax.random.normal(ks[10], (C, F), jnp.float32),
        "b1": 0.01 * jnp.ones((1, F), jnp.float32),
        "w2": s * jax.random.normal(ks[11], (F, C), jnp.float32),
        "b2": 0.01 * jnp.ones((1, C), jnp.float32),
        "ln2_g": 1.0 + 0.1 * jax.random.normal(ks[12], (1, C), jnp.float32),
        "ln2_b": 0.05 * jax.random.normal(ks[13], (1, C), jnp.float32),
    }


if __name__ == "__main__":
    key = jax.random.PRNGKey(0)
    k_x, k_p = jax.random.split(key)
    x = jax.random.normal(k_x, (T, B, C), jnp.float32)                # (T, B, C)
    # padding mask: last 2 tokens of batch element 1 are padding
    pad = jnp.zeros((B, T), jnp.bool_).at[1, T - 2:].set(True)
    params = init_params(k_p)

    # no attn_mask
    out = jax.block_until_ready(transformer_encoder_layer(x, pad, params))
    ref = reference(x, pad, params)
    assert out.shape == (T, B, C)
    assert jnp.allclose(out, ref, atol=1e-3, rtol=1e-3), "mismatch vs reference (no attn_mask)"

    # with an additive (T, T) attention mask (causal, -1e9 off-diagonal)
    causal = jnp.where(jnp.tril(jnp.ones((T, T), jnp.bool_)), 0.0, NEG_INF).astype(jnp.float32)
    out2 = jax.block_until_ready(transformer_encoder_layer(x, pad, params, causal))
    ref2 = reference(x, pad, params, causal)
    assert jnp.allclose(out2, ref2, atol=1e-3, rtol=1e-3), "mismatch vs reference (attn_mask)"

    print("KERNEL_OK")
</pallas_src>

<mosaic_0001>
module attributes {stable_mosaic.version = 11 : i64} {
  func.func @encoder_layer_kernel(%arg0: i32, %arg1: memref<16x33xf32, #tpu.memory_space<vmem>>, %arg2: memref<16x16xf32, #tpu.memory_space<vmem>>, %arg3: memref<12x33x8xf32, #tpu.memory_space<vmem>>, %arg4: memref<128x64xf32, #tpu.memory_space<vmem>>, %arg5: memref<8x64xf32, #tpu.memory_space<vmem>>, %arg6: memref<16x32xf32, #tpu.memory_space<vmem>>) attributes {dimension_semantics = [#tpu.dimension_semantics<arbitrary>], iteration_bounds = array<i64: 1>, scalar_prefetch = 0 : i64, scratch_operands = 0 : i64, tpu.core_type = #tpu.core_type<tc>, window_params = [{pipeline_mode = #tpu.pipeline_mode<synchronous>, transform_indices = @transform_0, window_bounds = array<i64: 16, 33>}, {pipeline_mode = #tpu.pipeline_mode<synchronous>, transform_indices = @transform_1, window_bounds = array<i64: 16, 16>}, {pipeline_mode = #tpu.pipeline_mode<synchronous>, transform_indices = @transform_2, window_bounds = array<i64: 12, 33, 8>}, {pipeline_mode = #tpu.pipeline_mode<synchronous>, transform_indices = @transform_3, window_bounds = array<i64: 128, 64>}, {pipeline_mode = #tpu.pipeline_mode<synchronous>, transform_indices = @transform_4, window_bounds = array<i64: 8, 64>}, {pipeline_mode = #tpu.pipeline_mode<synchronous>, transform_indices = @transform_5, window_bounds = array<i64: 16, 32>}]} {
    %c0 = arith.constant 0 : index
    %c0_0 = arith.constant 0 : index
    %0 = vector.load %arg1[%c0, %c0_0] : memref<16x33xf32, #tpu.memory_space<vmem>>, vector<16x33xf32>
    %1 = vector.extract_strided_slice %0 {offsets = [0, 0], sizes = [16, 32], strides = [1, 1]} : vector<16x33xf32> to vector<16x32xf32>
    %c0_1 = arith.constant 0 : index
    %c0_2 = arith.constant 0 : index
    %2 = vector.load %arg2[%c0_1, %c0_2] : memref<16x16xf32, #tpu.memory_space<vmem>>, vector<16x16xf32>
    %c0_3 = arith.constant 0 : index
    %c0_4 = arith.constant 0 : index
    %c0_5 = arith.constant 0 : index
    %3 = vector.load %arg3[%c0_3, %c0_4, %c0_5] : memref<12x33x8xf32, #tpu.memory_space<vmem>>, vector<1x33x8xf32>
    %4 = vector.shape_cast %3 : vector<1x33x8xf32> to vector<33x8xf32>
    %cst = arith.constant dense<0.000000e+00> : vector<16x8xf32>
    %5 = tpu.matmul %0, %4, %cst {dimension_numbers = #tpu.dot_dimension_numbers<[1], [0], [0], [1], [0, 0, 1, 1], [], []>} : vector<16x33xf32>, vector<33x8xf32>, vector<16x8xf32> -> vector<16x8xf32>
    %c4 = arith.constant 4 : index
    %c0_6 = arith.constant 0 : index
    %c0_7 = arith.constant 0 : index
    %6 = vector.load %arg3[%c4, %c0_6, %c0_7] : memref<12x33x8xf32, #tpu.memory_space<vmem>>, vector<1x33x8xf32>
    %7 = vector.shape_cast %6 : vector<1x33x8xf32> to vector<33x8xf32>
    %cst_8 = arith.constant dense<0.000000e+00> : vector<16x8xf32>
    %8 = tpu.matmul %0, %7, %cst_8 {dimension_numbers = #tpu.dot_dimension_numbers<[1], [0], [0], [1], [0, 0, 1, 1], [], []>} : vector<16x33xf32>, vector<33x8xf32>, vector<16x8xf32> -> vector<16x8xf32>
    %c8 = arith.constant 8 : index
    %c0_9 = arith.constant 0 : index
    %c0_10 = arith.constant 0 : index
    %9 = vector.load %arg3[%c8, %c0_9, %c0_10] : memref<12x33x8xf32, #tpu.memory_space<vmem>>, vector<1x33x8xf32>
    %10 = vector.shape_cast %9 : vector<1x33x8xf32> to vector<33x8xf32>
    %cst_11 = arith.constant dense<0.000000e+00> : vector<16x8xf32>
    %11 = tpu.matmul %0, %10, %cst_11 {dimension_numbers = #tpu.dot_dimension_numbers<[1], [0], [0], [1], [0, 0, 1, 1], [], []>} : vector<16x33xf32>, vector<33x8xf32>, vector<16x8xf32> -> vector<16x8xf32>
    %cst_12 = arith.constant dense<0.000000e+00> : vector<16x16xf32>
    %12 = tpu.matmul %5, %8, %cst_12 {dimension_numbers = #tpu.dot_dimension_numbers<[1], [1], [0], [0], [0, 0, 1, 0], [], []>} : vector<16x8xf32>, vector<16x8xf32>, vector<16x16xf32> -> vector<16x16xf32>
    %13 = arith.addf %12, %2 : vector<16x16xf32>
    %cst_13 = arith.constant dense<0xFF800000> : vector<16xf32>
    %14 = vector.multi_reduction <maximumf>, %13, %cst_13 [1] : vector<16x16xf32> to vector<16xf32>
    %15 = vector.shape_cast %14 : vector<16xf32> to vector<16x1xf32>
    %16 = vector.broadcast %15 : vector<16x1xf32> to vector<16x16xf32>
    %17 = arith.subf %13, %16 : vector<16x16xf32>
    %18 = math.exp %17 : vector<16x16xf32>
    %cst_14 = arith.constant dense<0.000000e+00> : vector<16xf32>
    %19 = vector.multi_reduction <add>, %18, %cst_14 [1] : vector<16x16xf32> to vector<16xf32>
    %20 = vector.shape_cast %19 : vector<16xf32> to vector<16x1xf32>
    %21 = vector.broadcast %20 : vector<16x1xf32> to vector<16x16xf32>
    %22 = arith.divf %18, %21 : vector<16x16xf32>
    %cst_15 = arith.constant dense<0.000000e+00> : vector<16x8xf32>
    %23 = tpu.matmul %22, %11, %cst_15 {dimension_numbers = #tpu.dot_dimension_numbers<[1], [0], [0], [1], [0, 0, 1, 1], [], []>} : vector<16x16xf32>, vector<16x8xf32>, vector<16x8xf32> -> vector<16x8xf32>
    %c0_16 = arith.constant 0 : index
    %c0_17 = arith.constant 0 : index
    %24 = vector.load %arg4[%c0_16, %c0_17] : memref<128x64xf32, #tpu.memory_space<vmem>>, vector<8x32xf32>
    %cst_18 = arith.constant dense<0.000000e+00> : vector<16x32xf32>
    %25 = tpu.matmul %23, %24, %cst_18 {dimension_numbers = #tpu.dot_dimension_numbers<[1], [0], [0], [1], [0, 0, 1, 1], [], []>} : vector<16x8xf32>, vector<8x32xf32>, vector<16x32xf32> -> vector<16x32xf32>
    %c1 = arith.constant 1 : index
    %c0_19 = arith.constant 0 : index
    %c0_20 = arith.constant 0 : index
    %26 = vector.load %arg3[%c1, %c0_19, %c0_20] : memref<12x33x8xf32, #tpu.memory_space<vmem>>, vector<1x33x8xf32>
    %27 = vector.shape_cast %26 : vector<1x33x8xf32> to vector<33x8xf32>
    %cst_21 = arith.constant dense<0.000000e+00> : vector<16x8xf32>
    %28 = tpu.matmul %0, %27, %cst_21 {dimension_numbers = #tpu.dot_dimension_numbers<[1], [0], [0], [1], [0, 0, 1, 1], [], []>} : vector<16x33xf32>, vector<33x8xf32>, vector<16x8xf32> -> vector<16x8xf32>
    %c5 = arith.constant 5 : index
    %c0_22 = arith.constant 0 : index
    %c0_23 = arith.constant 0 : index
    %29 = vector.load %arg3[%c5, %c0_22, %c0_23] : memref<12x33x8xf32, #tpu.memory_space<vmem>>, vector<1x33x8xf32>
    %30 = vector.shape_cast %29 : vector<1x33x8xf32> to vector<33x8xf32>
    %cst_24 = arith.constant dense<0.000000e+00> : vector<16x8xf32>
    %31 = tpu.matmul %0, %30, %cst_24 {dimension_numbers = #tpu.dot_dimension_numbers<[1], [0], [0], [1], [0, 0, 1, 1], [], []>} : vector<16x33xf32>, vector<33x8xf32>, vector<16x8xf32> -> vector<16x8xf32>
    %c9 = arith.constant 9 : index
    %c0_25 = arith.constant 0 : index
    %c0_26 = arith.constant 0 : index
    %32 = vector.load %arg3[%c9, %c0_25, %c0_26] : memref<12x33x8xf32, #tpu.memory_space<vmem>>, vector<1x33x8xf32>
    %33 = vector.shape_cast %32 : vector<1x33x8xf32> to vector<33x8xf32>
    %cst_27 = arith.constant dense<0.000000e+00> : vector<16x8xf32>
    %34 = tpu.matmul %0, %33, %cst_27 {dimension_numbers = #tpu.dot_dimension_numbers<[1], [0], [0], [1], [0, 0, 1, 1], [], []>} : vector<16x33xf32>, vector<33x8xf32>, vector<16x8xf32> -> vector<16x8xf32>
    %cst_28 = arith.constant dense<0.000000e+00> : vector<16x16xf32>
    %35 = tpu.matmul %28, %31, %cst_28 {dimension_numbers = #tpu.dot_dimension_numbers<[1], [1], [0], [0], [0, 0, 1, 0], [], []>} : vector<16x8xf32>, vector<16x8xf32>, vector<16x16xf32> -> vector<16x16xf32>
    %36 = arith.addf %35, %2 : vector<16x16xf32>
    %cst_29 = arith.constant dense<0xFF800000> : vector<16xf32>
    %37 = vector.multi_reduction <maximumf>, %36, %cst_29 [1] : vector<16x16xf32> to vector<16xf32>
    %38 = vector.shape_cast %37 : vector<16xf32> to vector<16x1xf32>
    %39 = vector.broadcast %38 : vector<16x1xf32> to vector<16x16xf32>
    %40 = arith.subf %36, %39 : vector<16x16xf32>
    %41 = math.exp %40 : vector<16x16xf32>
    %cst_30 = arith.constant dense<0.000000e+00> : vector<16xf32>
    %42 = vector.multi_reduction <add>, %41, %cst_30 [1] : vector<16x16xf32> to vector<16xf32>
    %43 = vector.shape_cast %42 : vector<16xf32> to vector<16x1xf32>
    %44 = vector.broadcast %43 : vector<16x1xf32> to vector<16x16xf32>
    %45 = arith.divf %41, %44 : vector<16x16xf32>
    %cst_31 = arith.constant dense<0.000000e+00> : vector<16x8xf32>
    %46 = tpu.matmul %45, %34, %cst_31 {dimension_numbers = #tpu.dot_dimension_numbers<[1], [0], [0], [1], [0, 0, 1, 1], [], []>} : vector<16x16xf32>, vector<16x8xf32>, vector<16x8xf32> -> vector<16x8xf32>
    %c8_32 = arith.constant 8 : index
    %c0_33 = arith.constant 0 : index
    %47 = vector.load %arg4[%c8_32, %c0_33] : memref<128x64xf32, #tpu.memory_space<vmem>>, vector<8x32xf32>
    %cst_34 = arith.constant dense<0.000000e+00> : vector<16x32xf32>
    %48 = tpu.matmul %46, %47, %cst_34 {dimension_numbers = #tpu.dot_dimension_numbers<[1], [0], [0], [1], [0, 0, 1, 1], [], []>} : vector<16x8xf32>, vector<8x32xf32>, vector<16x32xf32> -> vector<16x32xf32>
    %49 = arith.addf %25, %48 : vector<16x32xf32>
    %c2 = arith.constant 2 : index
    %c0_35 = arith.constant 0 : index
    %c0_36 = arith.constant 0 : index
    %50 = vector.load %arg3[%c2, %c0_35, %c0_36] : memref<12x33x8xf32, #tpu.memory_space<vmem>>, vector<1x33x8xf32>
    %51 = vector.shape_cast %50 : vector<1x33x8xf32> to vector<33x8xf32>
    %cst_37 = arith.constant dense<0.000000e+00> : vector<16x8xf32>
    %52 = tpu.matmul %0, %51, %cst_37 {dimension_numbers = #tpu.dot_dimension_numbers<[1], [0], [0], [1], [0, 0, 1, 1], [], []>} : vector<16x33xf32>, vector<33x8xf32>, vector<16x8xf32> -> vector<16x8xf32>
    %c6 = arith.constant 6 : index
    %c0_38 = arith.constant 0 : index
    %c0_39 = arith.constant 0 : index
    %53 = vector.load %arg3[%c6, %c0_38, %c0_39] : memref<12x33x8xf32, #tpu.memory_space<vmem>>, vector<1x33x8xf32>
    %54 = vector.shape_cast %53 : vector<1x33x8xf32> to vector<33x8xf32>
    %cst_40 = arith.constant dense<0.000000e+00> : vector<16x8xf32>
    %55 = tpu.matmul %0, %54, %cst_40 {dimension_numbers = #tpu.dot_dimension_numbers<[1], [0], [0], [1], [0, 0, 1, 1], [], []>} : vector<16x33xf32>, vector<33x8xf32>, vector<16x8xf32> -> vector<16x8xf32>
    %c10 = arith.constant 10 : index
    %c0_41 = arith.constant 0 : index
    %c0_42 = arith.constant 0 : index
    %56 = vector.load %arg3[%c10, %c0_41, %c0_42] : memref<12x33x8xf32, #tpu.memory_space<vmem>>, vector<1x33x8xf32>
    %57 = vector.shape_cast %56 : vector<1x33x8xf32> to vector<33x8xf32>
    %cst_43 = arith.constant dense<0.000000e+00> : vector<16x8xf32>
    %58 = tpu.matmul %0, %57, %cst_43 {dimension_numbers = #tpu.dot_dimension_numbers<[1], [0], [0], [1], [0, 0, 1, 1], [], []>} : vector<16x33xf32>, vector<33x8xf32>, vector<16x8xf32> -> vector<16x8xf32>
    %cst_44 = arith.constant dense<0.000000e+00> : vector<16x16xf32>
    %59 = tpu.matmul %52, %55, %cst_44 {dimension_numbers = #tpu.dot_dimension_numbers<[1], [1], [0], [0], [0, 0, 1, 0], [], []>} : vector<16x8xf32>, vector<16x8xf32>, vector<16x16xf32> -> vector<16x16xf32>
    %60 = arith.addf %59, %2 : vector<16x16xf32>
    %cst_45 = arith.constant dense<0xFF800000> : vector<16xf32>
    %61 = vector.multi_reduction <maximumf>, %60, %cst_45 [1] : vector<16x16xf32> to vector<16xf32>
    %62 = vector.shape_cast %61 : vector<16xf32> to vector<16x1xf32>
    %63 = vector.broadcast %62 : vector<16x1xf32> to vector<16x16xf32>
    %64 = arith.subf %60, %63 : vector<16x16xf32>
    %65 = math.exp %64 : vector<16x16xf32>
    %cst_46 = arith.constant dense<0.000000e+00> : vector<16xf32>
    %66 = vector.multi_reduction <add>, %65, %cst_46 [1] : vector<16x16xf32> to vector<16xf32>
    %67 = vector.shape_cast %66 : vector<16xf32> to vector<16x1xf32>
    %68 = vector.broadcast %67 : vector<16x1xf32> to vector<16x16xf32>
    %69 = arith.divf %65, %68 : vector<16x16xf32>
    %cst_47 = arith.constant dense<0.000000e+00> : vector<16x8xf32>
    %70 = tpu.matmul %69, %58, %cst_47 {dimension_numbers = #tpu.dot_dimension_numbers<[1], [0], [0], [1], [0, 0, 1, 1], [], []>} : vector<16x16xf32>, vector<16x8xf32>, vector<16x8xf32> -> vector<16x8xf32>
    %c16 = arith.constant 16 : index
    %c0_48 = arith.constant 0 : index
    %71 = vector.load %arg4[%c16, %c0_48] : memref<128x64xf32, #tpu.memory_space<vmem>>, vector<8x32xf32>
    %cst_49 = arith.constant dense<0.000000e+00> : vector<16x32xf32>
    %72 = tpu.matmul %70, %71, %cst_49 {dimension_numbers = #tpu.dot_dimension_numbers<[1], [0], [0], [1], [0, 0, 1, 1], [], []>} : vector<16x8xf32>, vector<8x32xf32>, vector<16x32xf32> -> vector<16x32xf32>
    %73 = arith.addf %49, %72 : vector<16x32xf32>
    %c3 = arith.constant 3 : index
    %c0_50 = arith.constant 0 : index
    %c0_51 = arith.constant 0 : index
    %74 = vector.load %arg3[%c3, %c0_50, %c0_51] : memref<12x33x8xf32, #tpu.memory_space<vmem>>, vector<1x33x8xf32>
    %75 = vector.shape_cast %74 : vector<1x33x8xf32> to vector<33x8xf32>
    %cst_52 = arith.constant dense<0.000000e+00> : vector<16x8xf32>
    %76 = tpu.matmul %0, %75, %cst_52 {dimension_numbers = #tpu.dot_dimension_numbers<[1], [0], [0], [1], [0, 0, 1, 1], [], []>} : vector<16x33xf32>, vector<33x8xf32>, vector<16x8xf32> -> vector<16x8xf32>
    %c7 = arith.constant 7 : index
    %c0_53 = arith.constant 0 : index
    %c0_54 = arith.constant 0 : index
    %77 = vector.load %arg3[%c7, %c0_53, %c0_54] : memref<12x33x8xf32, #tpu.memory_space<vmem>>, vector<1x33x8xf32>
    %78 = vector.shape_cast %77 : vector<1x33x8xf32> to vector<33x8xf32>
    %cst_55 = arith.constant dense<0.000000e+00> : vector<16x8xf32>
    %79 = tpu.matmul %0, %78, %cst_55 {dimension_numbers = #tpu.dot_dimension_numbers<[1], [0], [0], [1], [0, 0, 1, 1], [], []>} : vector<16x33xf32>, vector<33x8xf32>, vector<16x8xf32> -> vector<16x8xf32>
    %c11 = arith.constant 11 : index
    %c0_56 = arith.constant 0 : index
    %c0_57 = arith.constant 0 : index
    %80 = vector.load %arg3[%c11, %c0_56, %c0_57] : memref<12x33x8xf32, #tpu.memory_space<vmem>>, vector<1x33x8xf32>
    %81 = vector.shape_cast %80 : vector<1x33x8xf32> to vector<33x8xf32>
    %cst_58 = arith.constant dense<0.000000e+00> : vector<16x8xf32>
    %82 = tpu.matmul %0, %81, %cst_58 {dimension_numbers = #tpu.dot_dimension_numbers<[1], [0], [0], [1], [0, 0, 1, 1], [], []>} : vector<16x33xf32>, vector<33x8xf32>, vector<16x8xf32> -> vector<16x8xf32>
    %cst_59 = arith.constant dense<0.000000e+00> : vector<16x16xf32>
    %83 = tpu.matmul %76, %79, %cst_59 {dimension_numbers = #tpu.dot_dimension_numbers<[1], [1], [0], [0], [0, 0, 1, 0], [], []>} : vector<16x8xf32>, vector<16x8xf32>, vector<16x16xf32> -> vector<16x16xf32>
    %84 = arith.addf %83, %2 : vector<16x16xf32>
    %cst_60 = arith.constant dense<0xFF800000> : vector<16xf32>
    %85 = vector.multi_reduction <maximumf>, %84, %cst_60 [1] : vector<16x16xf32> to vector<16xf32>
    %86 = vector.shape_cast %85 : vector<16xf32> to vector<16x1xf32>
    %87 = vector.broadcast %86 : vector<16x1xf32> to vector<16x16xf32>
    %88 = arith.subf %84, %87 : vector<16x16xf32>
    %89 = math.exp %88 : vector<16x16xf32>
    %cst_61 = arith.constant dense<0.000000e+00> : vector<16xf32>
    %90 = vector.multi_reduction <add>, %89, %cst_61 [1] : vector<16x16xf32> to vector<16xf32>
    %91 = vector.shape_cast %90 : vector<16xf32> to vector<16x1xf32>
    %92 = vector.broadcast %91 : vector<16x1xf32> to vector<16x16xf32>
    %93 = arith.divf %89, %92 : vector<16x16xf32>
    %cst_62 = arith.constant dense<0.000000e+00> : vector<16x8xf32>
    %94 = tpu.matmul %93, %82, %cst_62 {dimension_numbers = #tpu.dot_dimension_numbers<[1], [0], [0], [1], [0, 0, 1, 1], [], []>} : vector<16x16xf32>, vector<16x8xf32>, vector<16x8xf32> -> vector<16x8xf32>
    %c24 = arith.constant 24 : index
    %c0_63 = arith.constant 0 : index
    %95 = vector.load %arg4[%c24, %c0_63] : memref<128x64xf32, #tpu.memory_space<vmem>>, vector<8x32xf32>
    %cst_64 = arith.constant dense<0.000000e+00> : vector<16x32xf32>
    %96 = tpu.matmul %94, %95, %cst_64 {dimension_numbers = #tpu.dot_dimension_numbers<[1], [0], [0], [1], [0, 0, 1, 1], [], []>} : vector<16x8xf32>, vector<8x32xf32>, vector<16x32xf32> -> vector<16x32xf32>
    %97 = arith.addf %73, %96 : vector<16x32xf32>
    %c0_65 = arith.constant 0 : index
    %c0_66 = arith.constant 0 : index
    %98 = vector.load %arg5[%c0_65, %c0_66] : memref<8x64xf32, #tpu.memory_space<vmem>>, vector<1x32xf32>
    %c1_67 = arith.constant 1 : index
    %c0_68 = arith.constant 0 : index
    %99 = vector.load %arg5[%c1_67, %c0_68] : memref<8x64xf32, #tpu.memory_space<vmem>>, vector<1x32xf32>
    %c2_69 = arith.constant 2 : index
    %c0_70 = arith.constant 0 : index
    %100 = vector.load %arg5[%c2_69, %c0_70] : memref<8x64xf32, #tpu.memory_space<vmem>>, vector<1x32xf32>
    %c3_71 = arith.constant 3 : index
    %c0_72 = arith.constant 0 : index
    %101 = vector.load %arg5[%c3_71, %c0_72] : memref<8x64xf32, #tpu.memory_space<vmem>>, vector<1x64xf32>
    %c4_73 = arith.constant 4 : index
    %c0_74 = arith.constant 0 : index
    %102 = vector.load %arg5[%c4_73, %c0_74] : memref<8x64xf32, #tpu.memory_space<vmem>>, vector<1x32xf32>
    %c5_75 = arith.constant 5 : index
    %c0_76 = arith.constant 0 : index
    %103 = vector.load %arg5[%c5_75, %c0_76] : memref<8x64xf32, #tpu.memory_space<vmem>>, vector<1x32xf32>
    %c6_77 = arith.constant 6 : index
    %c0_78 = arith.constant 0 : index
    %104 = vector.load %arg5[%c6_77, %c0_78] : memref<8x64xf32, #tpu.memory_space<vmem>>, vector<1x32xf32>
    %105 = arith.addf %1, %97 : vector<16x32xf32>
    %106 = vector.broadcast %98 : vector<1x32xf32> to vector<16x32xf32>
    %107 = arith.addf %105, %106 : vector<16x32xf32>
    %cst_79 = arith.constant dense<0.000000e+00> : vector<16xf32>
    %108 = vector.multi_reduction <add>, %107, %cst_79 [1] : vector<16x32xf32> to vector<16xf32>
    %109 = vector.shape_cast %108 : vector<16xf32> to vector<16x1xf32>
    %cst_80 = arith.constant 3.200000e+01 : f32
    %110 = vector.broadcast %cst_80 : f32 to vector<16x1xf32>
    %111 = arith.divf %109, %110 : vector<16x1xf32>
    %112 = vector.broadcast %111 : vector<16x1xf32> to vector<16x32xf32>
    %113 = arith.subf %107, %112 : vector<16x32xf32>
    %114 = arith.mulf %113, %113 : vector<16x32xf32>
    %cst_81 = arith.constant dense<0.000000e+00> : vector<16xf32>
    %115 = vector.multi_reduction <add>, %114, %cst_81 [1] : vector<16x32xf32> to vector<16xf32>
    %116 = vector.shape_cast %115 : vector<16xf32> to vector<16x1xf32>
    %cst_82 = arith.constant 3.200000e+01 : f32
    %117 = vector.broadcast %cst_82 : f32 to vector<16x1xf32>
    %118 = arith.divf %116, %117 : vector<16x1xf32>
    %119 = vector.broadcast %111 : vector<16x1xf32> to vector<16x32xf32>
    %120 = arith.subf %107, %119 : vector<16x32xf32>
    %cst_83 = arith.constant 9.99999974E-6 : f32
    %121 = vector.broadcast %cst_83 : f32 to vector<16x1xf32>
    %122 = arith.addf %118, %121 : vector<16x1xf32>
    %123 = math.rsqrt %122 : vector<16x1xf32>
    %124 = vector.broadcast %123 : vector<16x1xf32> to vector<16x32xf32>
    %125 = arith.mulf %120, %124 : vector<16x32xf32>
    %126 = vector.broadcast %99 : vector<1x32xf32> to vector<16x32xf32>
    %127 = arith.mulf %125, %126 : vector<16x32xf32>
    %128 = vector.broadcast %100 : vector<1x32xf32> to vector<16x32xf32>
    %129 = arith.addf %127, %128 : vector<16x32xf32>
    %c32 = arith.constant 32 : index
    %c0_84 = arith.constant 0 : index
    %130 = vector.load %arg4[%c32, %c0_84] : memref<128x64xf32, #tpu.memory_space<vmem>>, vector<32x64xf32>
    %c64 = arith.constant 64 : index
    %c0_85 = arith.constant 0 : index
    %131 = vector.load %arg4[%c64, %c0_85] : memref<128x64xf32, #tpu.memory_space<vmem>>, vector<64x32xf32>
    %cst_86 = arith.constant dense<0.000000e+00> : vector<16x64xf32>
    %132 = tpu.matmul %129, %130, %cst_86 {dimension_numbers = #tpu.dot_dimension_numbers<[1], [0], [0], [1], [0, 0, 1, 1], [], []>} : vector<16x32xf32>, vector<32x64xf32>, vector<16x64xf32> -> vector<16x64xf32>
    %133 = vector.broadcast %101 : vector<1x64xf32> to vector<16x64xf32>
    %134 = arith.addf %132, %133 : vector<16x64xf32>
    %cst_87 = arith.constant 0.000000e+00 : f32
    %135 = vector.broadcast %cst_87 : f32 to vector<16x64xf32>
    %136 = arith.maximumf %134, %135 : vector<16x64xf32>
    %cst_88 = arith.constant dense<0.000000e+00> : vector<16x32xf32>
    %137 = tpu.matmul %136, %131, %cst_88 {dimension_numbers = #tpu.dot_dimension_numbers<[1], [0], [0], [1], [0, 0, 1, 1], [], []>} : vector<16x64xf32>, vector<64x32xf32>, vector<16x32xf32> -> vector<16x32xf32>
    %138 = vector.broadcast %102 : vector<1x32xf32> to vector<16x32xf32>
    %139 = arith.addf %137, %138 : vector<16x32xf32>
    %140 = arith.addf %129, %139 : vector<16x32xf32>
    %cst_89 = arith.constant dense<0.000000e+00> : vector<16xf32>
    %141 = vector.multi_reduction <add>, %140, %cst_89 [1] : vector<16x32xf32> to vector<16xf32>
    %142 = vector.shape_cast %141 : vector<16xf32> to vector<16x1xf32>
    %cst_90 = arith.constant 3.200000e+01 : f32
    %143 = vector.broadcast %cst_90 : f32 to vector<16x1xf32>
    %144 = arith.divf %142, %143 : vector<16x1xf32>
    %145 = vector.broadcast %144 : vector<16x1xf32> to vector<16x32xf32>
    %146 = arith.subf %140, %145 : vector<16x32xf32>
    %147 = arith.mulf %146, %146 : vector<16x32xf32>
    %cst_91 = arith.constant dense<0.000000e+00> : vector<16xf32>
    %148 = vector.multi_reduction <add>, %147, %cst_91 [1] : vector<16x32xf32> to vector<16xf32>
    %149 = vector.shape_cast %148 : vector<16xf32> to vector<16x1xf32>
    %cst_92 = arith.constant 3.200000e+01 : f32
    %150 = vector.broadcast %cst_92 : f32 to vector<16x1xf32>
    %151 = arith.divf %149, %150 : vector<16x1xf32>
    %152 = vector.broadcast %144 : vector<16x1xf32> to vector<16x32xf32>
    %153 = arith.subf %140, %152 : vector<16x32xf32>
    %cst_93 = arith.constant 9.99999974E-6 : f32
    %154 = vector.broadcast %cst_93 : f32 to vector<16x1xf32>
    %155 = arith.addf %151, %154 : vector<16x1xf32>
    %156 = math.rsqrt %155 : vector<16x1xf32>
    %157 = vector.broadcast %156 : vector<16x1xf32> to vector<16x32xf32>
    %158 = arith.mulf %153, %157 : vector<16x32xf32>
    %159 = vector.broadcast %103 : vector<1x32xf32> to vector<16x32xf32>
    %160 = arith.mulf %158, %159 : vector<16x32xf32>
    %161 = vector.broadcast %104 : vector<1x32xf32> to vector<16x32xf32>
    %162 = arith.addf %160, %161 : vector<16x32xf32>
    %c0_94 = arith.constant 0 : index
    %c0_95 = arith.constant 0 : index
    %163 = vector.load %arg6[%c0_94, %c0_95] : memref<16x32xf32, #tpu.memory_space<vmem>>, vector<16x32xf32>
    tpu.vector_store %arg6[%c0_94, %c0_95], %162 {strides = array<i32>} : memref<16x32xf32, #tpu.memory_space<vmem>>, vector<16x32xf32>,
    return
  }
  func.func @transform_0(%arg0: i32) -> (i32, i32) {
    %c0_i32 = arith.constant 0 : i32
    %c0_i32_0 = arith.constant 0 : i32
    %c0_i32_1 = arith.constant 0 : i32
    return %c0_i32, %c0_i32_0 : i32, i32
  }
  func.func @transform_1(%arg0: i32) -> (i32, i32) {
    %c0_i32 = arith.constant 0 : i32
    %c0_i32_0 = arith.constant 0 : i32
    %c0_i32_1 = arith.constant 0 : i32
    return %c0_i32, %c0_i32_0 : i32, i32
  }
  func.func @transform_2(%arg0: i32) -> (i32, i32, i32) {
    %c0_i32 = arith.constant 0 : i32
    %c0_i32_0 = arith.constant 0 : i32
    %c0_i32_1 = arith.constant 0 : i32
    %c0_i32_2 = arith.constant 0 : i32
    return %c0_i32, %c0_i32_0, %c0_i32_1 : i32, i32, i32
  }
  func.func @transform_3(%arg0: i32) -> (i32, i32) {
    %c0_i32 = arith.constant 0 : i32
    %c0_i32_0 = arith.constant 0 : i32
    %c0_i32_1 = arith.constant 0 : i32
    return %c0_i32, %c0_i32_0 : i32, i32
  }
  func.func @transform_4(%arg0: i32) -> (i32, i32) {
    %c0_i32 = arith.constant 0 : i32
    %c0_i32_0 = arith.constant 0 : i32
    %c0_i32_1 = arith.constant 0 : i32
    return %c0_i32, %c0_i32_0 : i32, i32
  }
  func.func @transform_5(%arg0: i32) -> (i32, i32) {
    %c0_i32 = arith.constant 0 : i32
    %c0_i32_0 = arith.constant 0 : i32
    %c0_i32_1 = arith.constant 0 : i32
    return %c0_i32, %c0_i32_0 : i32, i32
  }
}

</mosaic_0001>

<llo_original>
// kernel: eq.8
$region0: #{eq.8}
  %s0 = inlined_call_operand.vmem [shape: s32[2,8], index: 0, kind: input, shape index: {}]
  %s1 = inlined_call_operand.vmem [shape: s32[16], index: 1, kind: output, shape index: {}]
  $region1: #{eq.8} parent=0
    #allocation0 [shape = 'u8[4096]{0}', space=vmem, size = 0x1000, scoped, tag = 'scoped mem for output reshape']
    #allocation1 [shape = 'u8[4096]{0}', space=vmem, size = 0x1000, scoped, tag = 'scoped mem for input reshape']
    %s3 = sshll.u32 1, 2
    %s4 = ssub.s32 %s3, 1
    %v5 = vld [vmem:[%s0] sm:%s4]
    %6 = vst [vmem:[#allocation1] sm:%s4] %v5
    %v7 = vld [vmem:[#allocation1] sm:$0x1]
    %vm8 = vcmask 64512
    %9 = vst.msk [vmem:[#allocation0] sm:$0x1] %vm8, %v7
    %s10 = scalar_lea.vmem [#allocation1], 1
    %v11 = vld [vmem:[%s10] sm:$0x1]
    %12 = vrot.lane.b32.xlu0 %v11, 8
    %v13 = vpop.permute.xlu0 %12
    %vm14 = vcmask 130112
    %15 = vst.msk [vmem:[#allocation0] sm:$0x1] %vm14, %v13
    %s17 = sshll.u32 1, 1
    %s18 = ssub.s32 %s17, 1
    %v20 = vld [vmem:[#allocation0] sm:%s18]
    %s21 = sshll.u32 1, 1
    %s22 = ssub.s32 %s21, 1
    %23 = vst [vmem:[%s1] sm:%s22] %v20

// kernel: transformer_encoder_layer.1
$region0: #{transformer_encoder_layer.1}
  #allocation0 [shape = 'u32[]', space=smem, size = 0x4, offset = 0x4, fixed_abs, tag = 'smem constant byte address 0x4 - core index']
  #allocation1 [shape = 'u32[144,128]{1,0:T(1,128)}', space=vmem, size = 0x12000, scoped, tag = 'internal scratch']
  %s0 = inlined_call_operand.vmem [shape: f32[16,33], index: 0, kind: input, shape index: {}]
  %s1 = inlined_call_operand.vmem [shape: f32[16,16], index: 1, kind: input, shape index: {}]
  %s2 = inlined_call_operand.vmem [shape: f32[12,33,8], index: 2, kind: input, shape index: {}]
  %s3 = inlined_call_operand.vmem [shape: f32[128,64], index: 3, kind: input, shape index: {}]
  %s4 = inlined_call_operand.vmem [shape: f32[8,64], index: 4, kind: input, shape index: {}]
  %s5 = inlined_call_operand.vmem [shape: f32[16,32], index: 5, kind: output, shape index: {}]
  %s6 = sld [smem:[#allocation0]]
  $region30: #{transformer_encoder_layer.1} parent=0
    _
  %s8 = ssub.s32 1, %s6
  %s9 = scalar_select 0, %s8, %s6
  // Predicated region
  $region2: #{transformer_encoder_layer.1} parent=0 // pred_check
    _
  $region3: #{transformer_encoder_layer.1} parent=0 // pred_check_branch
    %11 = sbr.rel (0) target = $region5
  $region4: #{transformer_encoder_layer.1} parent=0 // pred_region
    _
  $region5: #{transformer_encoder_layer.1} parent=0 // pred_fallthru
    _
  // Predicated region
  $region6: #{transformer_encoder_layer.1} parent=0 // pred_check
    _
  $region7: #{transformer_encoder_layer.1} parent=0 // pred_check_branch
    %13 = sbr.rel (0) target = $region9
  $region8: #{transformer_encoder_layer.1} parent=0 // pred_region
    _
  $region9: #{transformer_encoder_layer.1} parent=0 // pred_fallthru
    _
  // Predicated region
  $region10: #{transformer_encoder_layer.1} parent=0 // pred_check
    _
  $region11: #{transformer_encoder_layer.1} parent=0 // pred_check_branch
    %15 = sbr.rel (0) target = $region13
  $region12: #{transformer_encoder_layer.1} parent=0 // pred_region
    _
  $region13: #{transformer_encoder_layer.1} parent=0 // pred_fallthru
    _
  // Predicated region
  $region14: #{transformer_encoder_layer.1} parent=0 // pred_check
    _
  $region15: #{transformer_encoder_layer.1} parent=0 // pred_check_branch
    %17 = sbr.rel (0) target = $region17
  $region16: #{transformer_encoder_layer.1} parent=0 // pred_region
    _
  $region17: #{transformer_encoder_layer.1} parent=0 // pred_fallthru
    _
  // Predicated region
  $region18: #{transformer_encoder_layer.1} parent=0 // pred_check
    _
  $region19: #{transformer_encoder_layer.1} parent=0 // pred_check_branch
    %19 = sbr.rel (0) target = $region21
  $region20: #{transformer_encoder_layer.1} parent=0 // pred_region
    _
  $region21: #{transformer_encoder_layer.1} parent=0 // pred_fallthru
    _
  %v20 = vld [vmem:[%s0] sm:$0xff]
  %v21 = vld [vmem:[%s0 + $0x8] sm:$0xff]
  %v22 = vld [vmem:[%s1] sm:$0xff]
  %v23 = vld [vmem:[%s1 + $0x8] sm:$0xff]
  %v24 = vld [vmem:[%s2] sm:$0xff]
  %v25 = vld [vmem:[%s2 + $0x8] sm:$0xff]
  %v26 = vld [vmem:[%s2 + $0x10] sm:$0xff]
  %v27 = vld [vmem:[%s2 + $0x18] sm:$0xff]
  %v28 = vld [vmem:[%s2 + $0x20] sm:$0x1]
  %vm29 = vcmask 269312
  %v31 = vsel %vm29, %v20, 0
  %v34 = vsel %vm29, %v21, 0
  %vm36 = vcmask 1040384
  %v38 = vsel %vm36, %v28, 0
  %40 = vmatprep.subr.mxu0 0.0
  %41 = vmatpush1.msra.mxu0 0.0
  %42 = vmatprep.subr.mxu0 0.0
  %43 = vmatpush1.msra.mxu0 0.0
  %44 = vmatprep.subr.mxu0 0.0
  %45 = vmatpush1.msra.mxu0 0.0
  %46 = vmatprep.subr.mxu0 0.0
  %47 = vmatpush1.msra.mxu0 0.0
  %48 = vmatprep.subr.mxu0 0.0
  %49 = vmatpush1.msra.mxu0 0.0
  %50 = vmatprep.subr.mxu0 0.0
  %51 = vmatpush1.msra.mxu0 0.0
  %52 = vmatprep.subr.mxu0 0.0
  %53 = vmatpush1.msra.mxu0 0.0
  %54 = vmatprep.subr.mxu0 0.0
  %55 = vmatpush1.msra.mxu0 0.0
  %56 = vmatprep.subr.mxu0 0.0
  %57 = vmatpush1.msra.mxu0 0.0
  %58 = vmatprep.subr.mxu0 0.0
  %59 = vmatpush1.msra.mxu0 0.0
  %60 = vmatprep.subr.mxu0 0.0
  %61 = vmatpush1.msra.mxu0 0.0
  %62 = vmatprep.subr.mxu0 0.0
  %63 = vmatpush1.msra.mxu0 %v38
  %64 = vmatprep.subr.mxu0 0.0
  %65 = vmatpush1.msra.mxu0 %v27
  %66 = vmatprep.subr.mxu0 0.0
  %67 = vmatpush1.msra.mxu0 %v26
  %68 = vmatprep.subr.mxu0 0.0
  %69 = vmatpush1.msra.mxu0 %v25
  %70 = vmatprep.subr.mxu0 0.0
  %71 = vmatpush1.msra.mxu0 %v24
  %72 = vmatprep.subr.mxu0 0.0
  %73 = vmatpush2.msra.mxu0 0.0
  %74 = vmatprep.subr.mxu0 0.0
  %75 = vmatpush2.msra.mxu0 0.0
  %76 = vmatprep.subr.mxu0 0.0
  %77 = vmatpush2.msra.mxu0 0.0
  %78 = vmatprep.subr.mxu0 0.0
  %79 = vmatpush2.msra.mxu0 0.0
  %80 = vmatprep.subr.mxu0 0.0
  %81 = vmatpush2.msra.mxu0 0.0
  %82 = vmatprep.subr.mxu0 0.0
  %83 = vmatpush2.msra.mxu0 0.0
  %84 = vmatprep.subr.mxu0 0.0
  %85 = vmatpush2.msra.mxu0 0.0
  %86 = vmatprep.subr.mxu0 0.0
  %87 = vmatpush2.msra.mxu0 0.0
  %88 = vmatprep.subr.mxu0 0.0
  %89 = vmatpush2.msra.mxu0 0.0
  %90 = vmatprep.subr.mxu0 0.0
  %91 = vmatpush2.msra.mxu0 0.0
  %92 = vmatprep.subr.mxu0 0.0
  %93 = vmatpush2.msra.mxu0 0.0
  %94 = vmatprep.subr.mxu0 0.0
  %95 = vmatpush2.msra.mxu0 0.0
  %96 = vmatprep.subr.mxu0 0.0
  %97 = vmatpush2.msra.mxu0 0.0
  %98 = vmatprep.subr.mxu0 0.0
  %99 = vmatpush2.msra.mxu0 0.0
  %100 = vmatprep.subr.mxu0 0.0
  %101 = vmatpush2.msra.mxu0 0.0
  %102 = vmatprep.subr.mxu0 0.0
  %103 = vmatpush2.msra.mxu0 0.0
  %104 = vmatprep.mubr.f32.mxu0 0.0
  %105 = vmatmul.mubr.f32.gmra.mxu0 %v31
  %v106 = vpop.f32.mrf.mxu0
  %v107 = vadd.f32 0.0, %v106
  %v108 = vpop.f32.mrf.mxu0
  %109 = vmatprep.mubr.f32.mxu0 0.0
  %110 = vmatmul.mubr.f32.gmra.mxu0 %v34
  %v111 = vpop.f32.mrf.mxu0
  %v112 = vadd.f32 0.0, %v111
  %v113 = vpop.f32.mrf.mxu0
  %114 = vdwg.mxu0
  %s115 = scalar_lea.vmem %s2, 160
  %v116 = vld [vmem:[%s115] sm:$0xff]
  %v117 = vld [vmem:[%s115 + $0x8] sm:$0xff]
  %v118 = vld [vmem:[%s115 + $0x10] sm:$0xff]
  %v119 = vld [vmem:[%s115 + $0x18] sm:$0xff]
  %v120 = vld [vmem:[%s115 + $0x20] sm:$0x1]
  %v122 = vsel %vm36, %v120, 0
  %124 = vmatprep.subr.mxu0 0.0
  %125 = vmatpush1.msra.mxu0 0.0
  %126 = vmatprep.subr.mxu0 0.0
  %127 = vmatpush1.msra.mxu0 0.0
  %128 = vmatprep.subr.mxu0 0.0
  %129 = vmatpush1.msra.mxu0 0.0
  %130 = vmatprep.subr.mxu0 0.0
  %131 = vmatpush1.msra.mxu0 0.0
  %132 = vmatprep.subr.mxu0 0.0
  %133 = vmatpush1.msra.mxu0 0.0
  %134 = vmatprep.subr.mxu0 0.0
  %135 = vmatpush1.msra.mxu0 0.0
  %136 = vmatprep.subr.mxu0 0.0
  %137 = vmatpush1.msra.mxu0 0.0
  %138 = vmatprep.subr.mxu0 0.0
  %139 = vmatpush1.msra.mxu0 0.0
  %140 = vmatprep.subr.mxu0 0.0
  %141 = vmatpush1.msra.mxu0 0.0
  %142 = vmatprep.subr.mxu0 0.0
  %143 = vmatpush1.msra.mxu0 0.0
  %144 = vmatprep.subr.mxu0 0.0
  %145 = vmatpush1.msra.mxu0 0.0
  %146 = vmatprep.subr.mxu0 0.0
  %147 = vmatpush1.msra.mxu0 %v122
  %148 = vmatprep.subr.mxu0 0.0
  %149 = vmatpush1.msra.mxu0 %v119
  %150 = vmatprep.subr.mxu0 0.0
  %151 = vmatpush1.msra.mxu0 %v118
  %152 = vmatprep.subr.mxu0 0.0
  %153 = vmatpush1.msra.mxu0 %v117
  %154 = vmatprep.subr.mxu0 0.0
  %155 = vmatpush1.msra.mxu0 %v116
  %156 = vmatprep.subr.mxu0 0.0
  %157 = vmatpush2.msra.mxu0 0.0
  %158 = vmatprep.subr.mxu0 0.0
  %159 = vmatpush2.msra.mxu0 0.0
  %160 = vmatprep.subr.mxu0 0.0
  %161 = vmatpush2.msra.mxu0 0.0
  %162 = vmatprep.subr.mxu0 0.0
  %163 = vmatpush2.msra.mxu0 0.0
  %164 = vmatprep.subr.mxu0 0.0
  %165 = vmatpush2.msra.mxu0 0.0
  %166 = vmatprep.subr.mxu0 0.0
  %167 = vmatpush2.msra.mxu0 0.0
  %168 = vmatprep.subr.mxu0 0.0
  %169 = vmatpush2.msra.mxu0 0.0
  %170 = vmatprep.subr.mxu0 0.0
  %171 = vmatpush2.msra.mxu0 0.0
  %172 = vmatprep.subr.mxu0 0.0
  %173 = vmatpush2.msra.mxu0 0.0
  %174 = vmatprep.subr.mxu0 0.0
  %175 = vmatpush2.msra.mxu0 0.0
  %176 = vmatprep.subr.mxu0 0.0
  %177 = vmatpush2.msra.mxu0 0.0
  %178 = vmatprep.subr.mxu0 0.0
  %179 = vmatpush2.msra.mxu0 0.0
  %180 = vmatprep.subr.mxu0 0.0
  %181 = vmatpush2.msra.mxu0 0.0
  %182 = vmatprep.subr.mxu0 0.0
  %183 = vmatpush2.msra.mxu0 0.0
  %184 = vmatprep.subr.mxu0 0.0
  %185 = vmatpush2.msra.mxu0 0.0
  %186 = vmatprep.subr.mxu0 0.0
  %187 = vmatpush2.msra.mxu0 0.0
  %188 = vmatprep.mubr.f32.mxu0 0.0
  %189 = vmatmul.mubr.f32.gmra.mxu0 %v31
  %v190 = vpop.f32.mrf.mxu0
  %v191 = vadd.f32 0.0, %v190
  %v192 = vpop.f32.mrf.mxu0
  %193 = vmatprep.mubr.f32.mxu0 0.0
  %194 = vmatmul.mubr.f32.gmra.mxu0 %v34
  %v195 = vpop.f32.mrf.mxu0
  %v196 = vadd.f32 0.0, %v195
  %v197 = vpop.f32.mrf.mxu0
  %198 = vdwg.mxu0
  %s199 = scalar_lea.vmem %s2, 320
  %v200 = vld [vmem:[%s199] sm:$0xff]
  %v201 = vld [vmem:[%s199 + $0x8] sm:$0xff]
  %v202 = vld [vmem:[%s199 + $0x10] sm:$0xff]
  %v203 = vld [vmem:[%s199 + $0x18] sm:$0xff]
  %v204 = vld [vmem:[%s199 + $0x20] sm:$0x1]
  %v206 = vsel %vm36, %v204, 0
  %208 = vmatprep.subr.mxu0 0.0
  %209 = vmatpush1.msra.mxu0 0.0
  %210 = vmatprep.subr.mxu0 0.0
  %211 = vmatpush1.msra.mxu0 0.0
  %212 = vmatprep.subr.mxu0 0.0
  %213 = vmatpush1.msra.mxu0 0.0
  %214 = vmatprep.subr.mxu0 0.0
  %215 = vmatpush1.msra.mxu0 0.0
  %216 = vmatprep.subr.mxu0 0.0
  %217 = vmatpush1.msra.mxu0 0.0
  %218 = vmatprep.subr.mxu0 0.0
  %219 = vmatpush1.msra.mxu0 0.0
  %220 = vmatprep.subr.mxu0 0.0
  %221 = vmatpush1.msra.mxu0 0.0
  %222 = vmatprep.subr.mxu0 0.0
  %223 = vmatpush1.msra.mxu0 0.0
  %224 = vmatprep.subr.mxu0 0.0
  %225 = vmatpush1.msra.mxu0 0.0
  %226 = vmatprep.subr.mxu0 0.0
  %227 = vmatpush1.msra.mxu0 0.0
  %228 = vmatprep.subr.mxu0 0.0
  %229 = vmatpush1.msra.mxu0 0.0
  %230 = vmatprep.subr.mxu0 0.0
  %231 = vmatpush1.msra.mxu0 %v206
  %232 = vmatprep.subr.mxu0 0.0
  %233 = vmatpush1.msra.mxu0 %v203
  %234 = vmatprep.subr.mxu0 0.0
  %235 = vmatpush1.msra.mxu0 %v202
  %236 = vmatprep.subr.mxu0 0.0
  %237 = vmatpush1.msra.mxu0 %v201
  %238 = vmatprep.subr.mxu0 0.0
  %239 = vmatpush1.msra.mxu0 %v200
  %240 = vmatprep.subr.mxu0 0.0
  %241 = vmatpush2.msra.mxu0 0.0
  %242 = vmatprep.subr.mxu0 0.0
  %243 = vmatpush2.msra.mxu0 0.0
  %244 = vmatprep.subr.mxu0 0.0
  %245 = vmatpush2.msra.mxu0 0.0
  %246 = vmatprep.subr.mxu0 0.0
  %247 = vmatpush2.msra.mxu0 0.0
  %248 = vmatprep.subr.mxu0 0.0
  %249 = vmatpush2.msra.mxu0 0.0
  %250 = vmatprep.subr.mxu0 0.0
  %251 = vmatpush2.msra.mxu0 0.0
  %252 = vmatprep.subr.mxu0 0.0
  %253 = vmatpush2.msra.mxu0 0.0
  %254 = vmatprep.subr.mxu0 0.0
  %255 = vmatpush2.msra.mxu0 0.0
  %256 = vmatprep.subr.mxu0 0.0
  %257 = vmatpush2.msra.mxu0 0.0
  %258 = vmatprep.subr.mxu0 0.0
  %259 = vmatpush2.msra.mxu0 0.0
  %260 = vmatprep.subr.mxu0 0.0
  %261 = vmatpush2.msra.mxu0 0.0
  %262 = vmatprep.subr.mxu0 0.0
  %263 = vmatpush2.msra.mxu0 0.0
  %264 = vmatprep.subr.mxu0 0.0
  %265 = vmatpush2.msra.mxu0 0.0
  %266 = vmatprep.subr.mxu0 0.0
  %267 = vmatpush2.msra.mxu0 0.0
  %268 = vmatprep.subr.mxu0 0.0
  %269 = vmatpush2.msra.mxu0 0.0
  %270 = vmatprep.subr.mxu0 0.0
  %271 = vmatpush2.msra.mxu0 0.0
  %272 = vmatprep.mubr.f32.mxu0 0.0
  %273 = vmatmul.mubr.f32.gmra.mxu0 %v31
  %v274 = vpop.f32.mrf.mxu0
  %v275 = vadd.f32 0.0, %v274
  %v276 = vpop.f32.mrf.mxu0
  %277 = vmatprep.mubr.f32.mxu0 0.0
  %278 = vmatmul.mubr.f32.gmra.mxu0 %v34
  %v279 = vpop.f32.mrf.mxu0
  %v280 = vadd.f32 0.0, %v279
  %v281 = vpop.f32.mrf.mxu0
  %282 = vdwg.mxu0
  %vm283 = vcmask 64512
  %v285 = vsel %vm283, %v107, 0
  %v288 = vsel %vm283, %v112, 0
  %v291 = vsel %vm283, %v191, 0
  %v294 = vsel %vm283, %v196, 0
  %296 = vmatprep.subr.mxu0 0.0
  %297 = vmatpush1.xpose.msra.mxu0 0.0
  %298 = vmatprep.subr.mxu0 0.0
  %299 = vmatpush1.xpose.msra.mxu0 0.0
  %300 = vmatprep.subr.mxu0 0.0
  %301 = vmatpush1.xpose.msra.mxu0 0.0
  %302 = vmatprep.subr.mxu0 0.0
  %303 = vmatpush1.xpose.msra.mxu0 0.0
  %304 = vmatprep.subr.mxu0 0.0
  %305 = vmatpush1.xpose.msra.mxu0 0.0
  %306 = vmatprep.subr.mxu0 0.0
  %307 = vmatpush1.xpose.msra.mxu0 0.0
  %308 = vmatprep.subr.mxu0 0.0
  %309 = vmatpush1.xpose.msra.mxu0 0.0
  %310 = vmatprep.subr.mxu0 0.0
  %311 = vmatpush1.xpose.msra.mxu0 0.0
  %312 = vmatprep.subr.mxu0 0.0
  %313 = vmatpush1.xpose.msra.mxu0 0.0
  %314 = vmatprep.subr.mxu0 0.0
  %315 = vmatpush1.xpose.msra.mxu0 0.0
  %316 = vmatprep.subr.mxu0 0.0
  %317 = vmatpush1.xpose.msra.mxu0 0.0
  %318 = vmatprep.subr.mxu0 0.0
  %319 = vmatpush1.xpose.msra.mxu0 0.0
  %320 = vmatprep.subr.mxu0 0.0
  %321 = vmatpush1.xpose.msra.mxu0 0.0
  %322 = vmatprep.subr.mxu0 0.0
  %323 = vmatpush1.xpose.msra.mxu0 0.0
  %324 = vmatprep.subr.mxu0 0.0
  %325 = vmatpush1.xpose.msra.mxu0 %v294
  %326 = vmatprep.subr.mxu0 0.0
  %327 = vmatpush1.xpose.msra.mxu0 %v291
  %328 = vmatprep.subr.mxu0 0.0
  %329 = vmatpush2.xpose.msra.mxu0 0.0
  %330 = vmatprep.subr.mxu0 0.0
  %331 = vmatpush2.xpose.msra.mxu0 0.0
  %332 = vmatprep.subr.mxu0 0.0
  %333 = vmatpush2.xpose.msra.mxu0 0.0
  %334 = vmatprep.subr.mxu0 0.0
  %335 = vmatpush2.xpose.msra.mxu0 0.0
  %336 = vmatprep.subr.mxu0 0.0
  %337 = vmatpush2.xpose.msra.mxu0 0.0
  %338 = vmatprep.subr.mxu0 0.0
  %339 = vmatpush2.xpose.msra.mxu0 0.0
  %340 = vmatprep.subr.mxu0 0.0
  %341 = vmatpush2.xpose.msra.mxu0 0.0
  %342 = vmatprep.subr.mxu0 0.0
  %343 = vmatpush2.xpose.msra.mxu0 0.0
  %344 = vmatprep.subr.mxu0 0.0
  %345 = vmatpush2.xpose.msra.mxu0 0.0
  %346 = vmatprep.subr.mxu0 0.0
  %347 = vmatpush2.xpose.msra.mxu0 0.0
  %348 = vmatprep.subr.mxu0 0.0
  %349 = vmatpush2.xpose.msra.mxu0 0.0
  %350 = vmatprep.subr.mxu0 0.0
  %351 = vmatpush2.xpose.msra.mxu0 0.0
  %352 = vmatprep.subr.mxu0 0.0
  %353 = vmatpush2.xpose.msra.mxu0 0.0
  %354 = vmatprep.subr.mxu0 0.0
  %355 = vmatpush2.xpose.msra.mxu0 0.0
  %356 = vmatprep.subr.mxu0 0.0
  %357 = vmatpush2.xpose.msra.mxu0 0.0
  %358 = vmatprep.subr.mxu0 0.0
  %359 = vmatpush2.xpose.msra.mxu0 0.0
  %360 = vmatprep.mubr.f32.mxu0 0.0
  %361 = vmatmul.mubr.f32.gmra.mxu0 %v285
  %v362 = vpop.f32.mrf.mxu0
  %v363 = vadd.f32 %v22, %v362
  %v364 = vpop.f32.mrf.mxu0
  %365 = vmatprep.mubr.f32.mxu0 0.0
  %366 = vmatmul.mubr.f32.gmra.mxu0 %v288
  %v367 = vpop.f32.mrf.mxu0
  %v368 = vadd.f32 %v23, %v367
  %v369 = vpop.f32.mrf.mxu0
  %370 = vdwg.mxu0
  %vm371 = vcmask 130048
  %v372 = vsel %vm371, %v363, -inf
  %373 = vmax.xlane.f32.xlu0 %v372
  %v374 = vpop.xlane.xlu0 %373
  %v375 = vsel %vm371, %v368, -inf
  %376 = vmax.xlane.f32.xlu0 %v375
  %v377 = vpop.xlane.xlu0 %376
  %v378 = vsub.f32 %v363, %v374
  %v379 = vsub.f32 %v368, %v377
  %v380 = vmul.f32 %v378, 1.442695
  %v381 = vpow.pop %v380
  %v382 = vmul.f32 %v379, 1.442695
  %v383 = vpow.pop %v382
  %v384 = vsel %vm371, %v381, 0.0
  %385 = vadd.xlane.f32.xlu0 %v384
  %v386 = vpop.xlane.xlu0 %385
  %v387 = vsel %vm371, %v383, 0.0
  %388 = vadd.xlane.f32.xlu0 %v387
  %v389 = vpop.xlane.xlu0 %388
  %v390 = vrcp.pop %v386
  %v391 = vmul.f32 %v381, %v390
  %v392 = vrcp.pop %v389
  %v393 = vmul.f32 %v383, %v392
  %v395 = vsel %vm371, %v391, 0
  %v398 = vsel %vm371, %v393, 0
  %400 = vmatprep.subr.mxu0 0.0
  %401 = vmatpush1.msra.mxu0 0.0
  %402 = vmatprep.subr.mxu0 0.0
  %403 = vmatpush1.msra.mxu0 0.0
  %404 = vmatprep.subr.mxu0 0.0
  %405 = vmatpush1.msra.mxu0 0.0
  %406 = vmatprep.subr.mxu0 0.0
  %407 = vmatpush1.msra.mxu0 0.0
  %408 = vmatprep.subr.mxu0 0.0
  %409 = vmatpush1.msra.mxu0 0.0
  %410 = vmatprep.subr.mxu0 0.0
  %411 = vmatpush1.msra.mxu0 0.0
  %412 = vmatprep.subr.mxu0 0.0
  %413 = vmatpush1.msra.mxu0 0.0
  %414 = vmatprep.subr.mxu0 0.0
  %415 = vmatpush1.msra.mxu0 0.0
  %416 = vmatprep.subr.mxu0 0.0
  %417 = vmatpush1.msra.mxu0 0.0
  %418 = vmatprep.subr.mxu0 0.0
  %419 = vmatpush1.msra.mxu0 0.0
  %420 = vmatprep.subr.mxu0 0.0
  %421 = vmatpush1.msra.mxu0 0.0
  %422 = vmatprep.subr.mxu0 0.0
  %423 = vmatpush1.msra.mxu0 0.0
  %424 = vmatprep.subr.mxu0 0.0
  %425 = vmatpush1.msra.mxu0 0.0
  %426 = vmatprep.subr.mxu0 0.0
  %427 = vmatpush1.msra.mxu0 0.0
  %428 = vmatprep.subr.mxu0 0.0
  %429 = vmatpush1.msra.mxu0 %v280
  %430 = vmatprep.subr.mxu0 0.0
  %431 = vmatpush1.msra.mxu0 %v275
  %432 = vmatprep.subr.mxu0 0.0
  %433 = vmatpush2.msra.mxu0 0.0
  %434 = vmatprep.subr.mxu0 0.0
  %435 = vmatpush2.msra.mxu0 0.0
  %436 = vmatprep.subr.mxu0 0.0
  %437 = vmatpush2.msra.mxu0 0.0
  %438 = vmatprep.subr.mxu0 0.0
  %439 = vmatpush2.msra.mxu0 0.0
  %440 = vmatprep.subr.mxu0 0.0
  %441 = vmatpush2.msra.mxu0 0.0
  %442 = vmatprep.subr.mxu0 0.0
  %443 = vmatpush2.msra.mxu0 0.0
  %444 = vmatprep.subr.mxu0 0.0
  %445 = vmatpush2.msra.mxu0 0.0
  %446 = vmatprep.subr.mxu0 0.0
  %447 = vmatpush2.msra.mxu0 0.0
  %448 = vmatprep.subr.mxu0 0.0
  %449 = vmatpush2.msra.mxu0 0.0
  %450 = vmatprep.subr.mxu0 0.0
  %451 = vmatpush2.msra.mxu0 0.0
  %452 = vmatprep.subr.mxu0 0.0
  %453 = vmatpush2.msra.mxu0 0.0
  %454 = vmatprep.subr.mxu0 0.0
  %455 = vmatpush2.msra.mxu0 0.0
  %456 = vmatprep.subr.mxu0 0.0
  %457 = vmatpush2.msra.mxu0 0.0
  %458 = vmatprep.subr.mxu0 0.0
  %459 = vmatpush2.msra.mxu0 0.0
  %460 = vmatprep.subr.mxu0 0.0
  %461 = vmatpush2.msra.mxu0 0.0
  %462 = vmatprep.subr.mxu0 0.0
  %463 = vmatpush2.msra.mxu0 0.0
  %464 = vmatprep.mubr.f32.mxu0 0.0
  %465 = vmatmul.mubr.f32.gmra.mxu0 %v395
  %v466 = vpop.f32.mrf.mxu0
  %v467 = vadd.f32 0.0, %v466
  %v468 = vpop.f32.mrf.mxu0
  %469 = vmatprep.mubr.f32.mxu0 0.0
  %470 = vmatmul.mubr.f32.gmra.mxu0 %v398
  %v471 = vpop.f32.mrf.mxu0
  %v472 = vadd.f32 0.0, %v471
  %v473 = vpop.f32.mrf.mxu0
  %474 = vdwg.mxu0
  %v475 = vld [vmem:[%s3] sm:$0xff]
  %s476 = scalar_lea.vmem %s2, 40
  %v477 = vld [vmem:[%s476] sm:$0xff]
  %v478 = vld [vmem:[%s476 + $0x8] sm:$0xff]
  %v479 = vld [vmem:[%s476 + $0x10] sm:$0xff]
  %v480 = vld [vmem:[%s476 + $0x18] sm:$0xff]
  %v481 = vld [vmem:[%s476 + $0x20] sm:$0x1]
  %v483 = vsel %vm36, %v481, 0
  %485 = vmatprep.subr.mxu0 0.0
  %486 = vmatpush1.msra.mxu0 0.0
  %487 = vmatprep.subr.mxu0 0.0
  %488 = vmatpush1.msra.mxu0 0.0
  %489 = vmatprep.subr.mxu0 0.0
  %490 = vmatpush1.msra.mxu0 0.0
  %491 = vmatprep.subr.mxu0 0.0
  %492 = vmatpush1.msra.mxu0 0.0
  %493 = vmatprep.subr.mxu0 0.0
  %494 = vmatpush1.msra.mxu0 0.0
  %495 = vmatprep.subr.mxu0 0.0
  %496 = vmatpush1.msra.mxu0 0.0
  %497 = vmatprep.subr.mxu0 0.0
  %498 = vmatpush1.msra.mxu0 0.0
  %499 = vmatprep.subr.mxu0 0.0
  %500 = vmatpush1.msra.mxu0 0.0
  %501 = vmatprep.subr.mxu0 0.0
  %502 = vmatpush1.msra.mxu0 0.0
  %503 = vmatprep.subr.mxu0 0.0
  %504 = vmatpush1.msra.mxu0 0.0
  %505 = vmatprep.subr.mxu0 0.0
  %506 = vmatpush1.msra.mxu0 0.0
  %507 = vmatprep.subr.mxu0 0.0
  %508 = vmatpush1.msra.mxu0 %v483
  %509 = vmatprep.subr.mxu0 0.0
  %510 = vmatpush1.msra.mxu0 %v480
  %511 = vmatprep.subr.mxu0 0.0
  %512 = vmatpush1.msra.mxu0 %v479
  %513 = vmatprep.subr.mxu0 0.0
  %514 = vmatpush1.msra.mxu0 %v478
  %515 = vmatprep.subr.mxu0 0.0
  %516 = vmatpush1.msra.mxu0 %v477
  %517 = vmatprep.subr.mxu0 0.0
  %518 = vmatpush2.msra.mxu0 0.0
  %519 = vmatprep.subr.mxu0 0.0
  %520 = vmatpush2.msra.mxu0 0.0
  %521 = vmatprep.subr.mxu0 0.0
  %522 = vmatpush2.msra.mxu0 0.0
  %523 = vmatprep.subr.mxu0 0.0
  %524 = vmatpush2.msra.mxu0 0.0
  %525 = vmatprep.subr.mxu0 0.0
  %526 = vmatpush2.msra.mxu0 0.0
  %527 = vmatprep.subr.mxu0 0.0
  %528 = vmatpush2.msra.mxu0 0.0
  %529 = vmatprep.subr.mxu0 0.0
  %530 = vmatpush2.msra.mxu0 0.0
  %531 = vmatprep.subr.mxu0 0.0
  %532 = vmatpush2.msra.mxu0 0.0
  %533 = vmatprep.subr.mxu0 0.0
  %534 = vmatpush2.msra.mxu0 0.0
  %535 = vmatprep.subr.mxu0 0.0
  %536 = vmatpush2.msra.mxu0 0.0
  %537 = vmatprep.subr.mxu0 0.0
  %538 = vmatpush2.msra.mxu0 0.0
  %539 = vmatprep.subr.mxu0 0.0
  %540 = vmatpush2.msra.mxu0 0.0
  %541 = vmatprep.subr.mxu0 0.0
  %542 = vmatpush2.msra.mxu0 0.0
  %543 = vmatprep.subr.mxu0 0.0
  %544 = vmatpush2.msra.mxu0 0.0
  %545 = vmatprep.subr.mxu0 0.0
  %546 = vmatpush2.msra.mxu0 0.0
  %547 = vmatprep.subr.mxu0 0.0
  %548 = vmatpush2.msra.mxu0 0.0
  %549 = vmatprep.mubr.f32.mxu0 0.0
  %550 = vmatmul.mubr.f32.gmra.mxu0 %v31
  %v551 = vpop.f32.mrf.mxu0
  %v552 = vadd.f32 0.0, %v551
  %v553 = vpop.f32.mrf.mxu0
  %554 = vmatprep.mubr.f32.mxu0 0.0
  %555 = vmatmul.mubr.f32.gmra.mxu0 %v34
  %v556 = vpop.f32.mrf.mxu0
  %v557 = vadd.f32 0.0, %v556
  %v558 = vpop.f32.mrf.mxu0
  %559 = vdwg.mxu0
  %s560 = scalar_lea.vmem %s2, 200
  %v561 = vld [vmem:[%s560] sm:$0xff]
  %v562 = vld [vmem:[%s560 + $0x8] sm:$0xff]
  %v563 = vld [vmem:[%s560 + $0x10] sm:$0xff]
  %v564 = vld [vmem:[%s560 + $0x18] sm:$0xff]
  %v565 = vld [vmem:[%s560 + $0x20] sm:$0x1]
  %v567 = vsel %vm36, %v565, 0
  %569 = vmatprep.subr.mxu0 0.0
  %570 = vmatpush1.msra.mxu0 0.0
  %571 = vmatprep.subr.mxu0 0.0
  %572 = vmatpush1.msra.mxu0 0.0
  %573 = vmatprep.subr.mxu0 0.0
  %574 = vmatpush1.msra.mxu0 0.0
  %575 = vmatprep.subr.mxu0 0.0
  %576 = vmatpush1.msra.mxu0 0.0
  %577 = vmatprep.subr.mxu0 0.0
  %578 = vmatpush1.msra.mxu0 0.0
  %579 = vmatprep.subr.mxu0 0.0
  %580 = vmatpush1.msra.mxu0 0.0
  %581 = vmatprep.subr.mxu0 0.0
  %582 = vmatpush1.msra.mxu0 0.0
  %583 = vmatprep.subr.mxu0 0.0
  %584 = vmatpush1.msra.mxu0 0.0
  %585 = vmatprep.subr.mxu0 0.0
  %586 = vmatpush1.msra.mxu0 0.0
  %587 = vmatprep.subr.mxu0 0.0
  %588 = vmatpush1.msra.mxu0 0.0
  %589 = vmatprep.subr.mxu0 0.0
  %590 = vmatpush1.msra.mxu0 0.0
  %591 = vmatprep.subr.mxu0 0.0
  %592 = vmatpush1.msra.mxu0 %v567
  %593 = vmatprep.subr.mxu0 0.0
  %594 = vmatpush1.msra.mxu0 %v564
  %595 = vmatprep.subr.mxu0 0.0
  %596 = vmatpush1.msra.mxu0 %v563
  %597 = vmatprep.subr.mxu0 0.0
  %598 = vmatpush1.msra.mxu0 %v562
  %599 = vmatprep.subr.mxu0 0.0
  %600 = vmatpush1.msra.mxu0 %v561
  %601 = vmatprep.subr.mxu0 0.0
  %602 = vmatpush2.msra.mxu0 0.0
  %603 = vmatprep.subr.mxu0 0.0
  %604 = vmatpush2.msra.mxu0 0.0
  %605 = vmatprep.subr.mxu0 0.0
  %606 = vmatpush2.msra.mxu0 0.0
  %607 = vmatprep.subr.mxu0 0.0
  %608 = vmatpush2.msra.mxu0 0.0
  %609 = vmatprep.subr.mxu0 0.0
  %610 = vmatpush2.msra.mxu0 0.0
  %611 = vmatprep.subr.mxu0 0.0
  %612 = vmatpush2.msra.mxu0 0.0
  %613 = vmatprep.subr.mxu0 0.0
  %614 = vmatpush2.msra.mxu0 0.0
  %615 = vmatprep.subr.mxu0 0.0
  %616 = vmatpush2.msra.mxu0 0.0
  %617 = vmatprep.subr.mxu0 0.0
  %618 = vmatpush2.msra.mxu0 0.0
  %619 = vmatprep.subr.mxu0 0.0
  %620 = vmatpush2.msra.mxu0 0.0
  %621 = vmatprep.subr.mxu0 0.0
  %622 = vmatpush2.msra.mxu0 0.0
  %623 = vmatprep.subr.mxu0 0.0
  %624 = vmatpush2.msra.mxu0 0.0
  %625 = vmatprep.subr.mxu0 0.0
  %626 = vmatpush2.msra.mxu0 0.0
  %627 = vmatprep.subr.mxu0 0.0
  %628 = vmatpush2.msra.mxu0 0.0
  %629 = vmatprep.subr.mxu0 0.0
  %630 = vmatpush2.msra.mxu0 0.0
  %631 = vmatprep.subr.mxu0 0.0
  %632 = vmatpush2.msra.mxu0 0.0
  %633 = vmatprep.mubr.f32.mxu0 0.0
  %634 = vmatmul.mubr.f32.gmra.mxu0 %v31
  %v635 = vpop.f32.mrf.mxu0
  %v636 = vadd.f32 0.0, %v635
  %v637 = vpop.f32.mrf.mxu0
  %638 = vmatprep.mubr.f32.mxu0 0.0
  %639 = vmatmul.mubr.f32.gmra.mxu0 %v34
  %v640 = vpop.f32.mrf.mxu0
  %v641 = vadd.f32 0.0, %v640
  %v642 = vpop.f32.mrf.mxu0
  %643 = vdwg.mxu0
  %s644 = scalar_lea.vmem %s2, 360
  %v645 = vld [vmem:[%s644] sm:$0xff]
  %v646 = vld [vmem:[%s644 + $0x8] sm:$0xff]
  %v647 = vld [vmem:[%s644 + $0x10] sm:$0xff]
  %v648 = vld [vmem:[%s644 + $0x18] sm:$0xff]
  %v649 = vld [vmem:[%s644 + $0x20] sm:$0x1]
  %v651 = vsel %vm36, %v649, 0
  %653 = vmatprep.subr.mxu0 0.0
  %654 = vmatpush1.msra.mxu0 0.0
  %655 = vmatprep.subr.mxu0 0.0
  %656 = vmatpush1.msra.mxu0 0.0
  %657 = vmatprep.subr.mxu0 0.0
  %658 = vmatpush1.msra.mxu0 0.0
  %659 = vmatprep.subr.mxu0 0.0
  %660 = vmatpush1.msra.mxu0 0.0
  %661 = vmatprep.subr.mxu0 0.0
  %662 = vmatpush1.msra.mxu0 0.0
  %663 = vmatprep.subr.mxu0 0.0
  %664 = vmatpush1.msra.mxu0 0.0
  %665 = vmatprep.subr.mxu0 0.0
  %666 = vmatpush1.msra.mxu0 0.0
  %667 = vmatprep.subr.mxu0 0.0
  %668 = vmatpush1.msra.mxu0 0.0
  %669 = vmatprep.subr.mxu0 0.0
  %670 = vmatpush1.msra.mxu0 0.0
  %671 = vmatprep.subr.mxu0 0.0
  %672 = vmatpush1.msra.mxu0 0.0
  %673 = vmatprep.subr.mxu0 0.0
  %674 = vmatpush1.msra.mxu0 0.0
  %675 = vmatprep.subr.mxu0 0.0
  %676 = vmatpush1.msra.mxu0 %v651
  %677 = vmatprep.subr.mxu0 0.0
  %678 = vmatpush1.msra.mxu0 %v648
  %679 = vmatprep.subr.mxu0 0.0
  %680 = vmatpush1.msra.mxu0 %v647
  %681 = vmatprep.subr.mxu0 0.0
  %682 = vmatpush1.msra.mxu0 %v646
  %683 = vmatprep.subr.mxu0 0.0
  %684 = vmatpush1.msra.mxu0 %v645
  %685 = vmatprep.subr.mxu0 0.0
  %686 = vmatpush2.msra.mxu0 0.0
  %687 = vmatprep.subr.mxu0 0.0
  %688 = vmatpush2.msra.mxu0 0.0
  %689 = vmatprep.subr.mxu0 0.0
  %690 = vmatpush2.msra.mxu0 0.0
  %691 = vmatprep.subr.mxu0 0.0
  %692 = vmatpush2.msra.mxu0 0.0
  %693 = vmatprep.subr.mxu0 0.0
  %694 = vmatpush2.msra.mxu0 0.0
  %695 = vmatprep.subr.mxu0 0.0
  %696 = vmatpush2.msra.mxu0 0.0
  %697 = vmatprep.subr.mxu0 0.0
  %698 = vmatpush2.msra.mxu0 0.0
  %699 = vmatprep.subr.mxu0 0.0
  %700 = vmatpush2.msra.mxu0 0.0
  %701 = vmatprep.subr.mxu0 0.0
  %702 = vmatpush2.msra.mxu0 0.0
  %703 = vmatprep.subr.mxu0 0.0
  %704 = vmatpush2.msra.mxu0 0.0
  %705 = vmatprep.subr.mxu0 0.0
  %706 = vmatpush2.msra.mxu0 0.0
  %707 = vmatprep.subr.mxu0 0.0
  %708 = vmatpush2.msra.mxu0 0.0
  %709 = vmatprep.subr.mxu0 0.0
  %710 = vmatpush2.msra.mxu0 0.0
  %711 = vmatprep.subr.mxu0 0.0
  %712 = vmatpush2.msra.mxu0 0.0
  %713 = vmatprep.subr.mxu0 0.0
  %714 = vmatpush2.msra.mxu0 0.0
  %715 = vmatprep.subr.mxu0 0.0
  %716 = vmatpush2.msra.mxu0 0.0
  %717 = vmatprep.mubr.f32.mxu0 0.0
  %718 = vmatmul.mubr.f32.gmra.mxu0 %v31
  %v719 = vpop.f32.mrf.mxu0
  %v720 = vadd.f32 0.0, %v719
  %v721 = vpop.f32.mrf.mxu0
  %722 = vmatprep.mubr.f32.mxu0 0.0
  %723 = vmatmul.mubr.f32.gmra.mxu0 %v34
  %v724 = vpop.f32.mrf.mxu0
  %v725 = vadd.f32 0.0, %v724
  %v726 = vpop.f32.mrf.mxu0
  %727 = vdwg.mxu0
  %v729 = vsel %vm283, %v552, 0
  %v732 = vsel %vm283, %v557, 0
  %v735 = vsel %vm283, %v636, 0
  %v738 = vsel %vm283, %v641, 0
  %740 = vmatprep.subr.mxu0 0.0
  %741 = vmatpush1.xpose.msra.mxu0 0.0
  %742 = vmatprep.subr.mxu0 0.0
  %743 = vmatpush1.xpose.msra.mxu0 0.0
  %744 = vmatprep.subr.mxu0 0.0
  %745 = vmatpush1.xpose.msra.mxu0 0.0
  %746 = vmatprep.subr.mxu0 0.0
  %747 = vmatpush1.xpose.msra.mxu0 0.0
  %748 = vmatprep.subr.mxu0 0.0
  %749 = vmatpush1.xpose.msra.mxu0 0.0
  %750 = vmatprep.subr.mxu0 0.0
  %751 = vmatpush1.xpose.msra.mxu0 0.0
  %752 = vmatprep.subr.mxu0 0.0
  %753 = vmatpush1.xpose.msra.mxu0 0.0
  %754 = vmatprep.subr.mxu0 0.0
  %755 = vmatpush1.xpose.msra.mxu0 0.0
  %756 = vmatprep.subr.mxu0 0.0
  %757 = vmatpush1.xpose.msra.mxu0 0.0
  %758 = vmatprep.subr.mxu0 0.0
  %759 = vmatpush1.xpose.msra.mxu0 0.0
  %760 = vmatprep.subr.mxu0 0.0
  %761 = vmatpush1.xpose.msra.mxu0 0.0
  %762 = vmatprep.subr.mxu0 0.0
  %763 = vmatpush1.xpose.msra.mxu0 0.0
  %764 = vmatprep.subr.mxu0 0.0
  %765 = vmatpush1.xpose.msra.mxu0 0.0
  %766 = vmatprep.subr.mxu0 0.0
  %767 = vmatpush1.xpose.msra.mxu0 0.0
  %768 = vmatprep.subr.mxu0 0.0
  %769 = vmatpush1.xpose.msra.mxu0 %v738
  %770 = vmatprep.subr.mxu0 0.0
  %771 = vmatpush1.xpose.msra.mxu0 %v735
  %772 = vmatprep.subr.mxu0 0.0
  %773 = vmatpush2.xpose.msra.mxu0 0.0
  %774 = vmatprep.subr.mxu0 0.0
  %775 = vmatpush2.xpose.msra.mxu0 0.0
  %776 = vmatprep.subr.mxu0 0.0
  %777 = vmatpush2.xpose.msra.mxu0 0.0
  %778 = vmatprep.subr.mxu0 0.0
  %779 = vmatpush2.xpose.msra.mxu0 0.0
  %780 = vmatprep.subr.mxu0 0.0
  %781 = vmatpush2.xpose.msra.mxu0 0.0
  %782 = vmatprep.subr.mxu0 0.0
  %783 = vmatpush2.xpose.msra.mxu0 0.0
  %784 = vmatprep.subr.mxu0 0.0
  %785 = vmatpush2.xpose.msra.mxu0 0.0
  %786 = vmatprep.subr.mxu0 0.0
  %787 = vmatpush2.xpose.msra.mxu0 0.0
  %788 = vmatprep.subr.mxu0 0.0
  %789 = vmatpush2.xpose.msra.mxu0 0.0
  %790 = vmatprep.subr.mxu0 0.0
  %791 = vmatpush2.xpose.msra.mxu0 0.0
  %792 = vmatprep.subr.mxu0 0.0
  %793 = vmatpush2.xpose.msra.mxu0 0.0
  %794 = vmatprep.subr.mxu0 0.0
  %795 = vmatpush2.xpose.msra.mxu0 0.0
  %796 = vmatprep.subr.mxu0 0.0
  %797 = vmatpush2.xpose.msra.mxu0 0.0
  %798 = vmatprep.subr.mxu0 0.0
  %799 = vmatpush2.xpose.msra.mxu0 0.0
  %800 = vmatprep.subr.mxu0 0.0
  %801 = vmatpush2.xpose.msra.mxu0 0.0
  %802 = vmatprep.subr.mxu0 0.0
  %803 = vmatpush2.xpose.msra.mxu0 0.0
  %804 = vmatprep.mubr.f32.mxu0 0.0
  %805 = vmatmul.mubr.f32.gmra.mxu0 %v729
  %v806 = vpop.f32.mrf.mxu0
  %v807 = vadd.f32 %v22, %v806
  %v808 = vpop.f32.mrf.mxu0
  %809 = vmatprep.mubr.f32.mxu0 0.0
  %810 = vmatmul.mubr.f32.gmra.mxu0 %v732
  %v811 = vpop.f32.mrf.mxu0
  %v812 = vadd.f32 %v23, %v811
  %v813 = vpop.f32.mrf.mxu0
  %814 = vdwg.mxu0
  %v815 = vsel %vm371, %v807, -inf
  %816 = vmax.xlane.f32.xlu0 %v815
  %v817 = vpop.xlane.xlu0 %816
  %v818 = vsel %vm371, %v812, -inf
  %819 = vmax.xlane.f32.xlu0 %v818
  %v820 = vpop.xlane.xlu0 %819
  %v821 = vsub.f32 %v807, %v817
  %v822 = vsub.f32 %v812, %v820
  %v823 = vmul.f32 %v821, 1.442695
  %v824 = vpow.pop %v823
  %v825 = vmul.f32 %v822, 1.442695
  %v826 = vpow.pop %v825
  %v827 = vsel %vm371, %v824, 0.0
  %828 = vadd.xlane.f32.xlu0 %v827
  %v829 = vpop.xlane.xlu0 %828
  %v830 = vsel %vm371, %v826, 0.0
  %831 = vadd.xlane.f32.xlu0 %v830
  %v832 = vpop.xlane.xlu0 %831
  %v833 = vrcp.pop %v829
  %v834 = vmul.f32 %v824, %v833
  %v835 = vrcp.pop %v832
  %v836 = vmul.f32 %v826, %v835
  %v838 = vsel %vm371, %v834, 0
  %v841 = vsel %vm371, %v836, 0
  %843 = vmatprep.subr.mxu0 0.0
  %844 = vmatpush1.msra.mxu0 0.0
  %845 = vmatprep.subr.mxu0 0.0
  %846 = vmatpush1.msra.mxu0 0.0
  %847 = vmatprep.subr.mxu0 0.0
  %848 = vmatpush1.msra.mxu0 0.0
  %849 = vmatprep.subr.mxu0 0.0
  %850 = vmatpush1.msra.mxu0 0.0
  %851 = vmatprep.subr.mxu0 0.0
  %852 = vmatpush1.msra.mxu0 0.0
  %853 = vmatprep.subr.mxu0 0.0
  %854 = vmatpush1.msra.mxu0 0.0
  %855 = vmatprep.subr.mxu0 0.0
  %856 = vmatpush1.msra.mxu0 0.0
  %857 = vmatprep.subr.mxu0 0.0
  %858 = vmatpush1.msra.mxu0 0.0
  %859 = vmatprep.subr.mxu0 0.0
  %860 = vmatpush1.msra.mxu0 0.0
  %861 = vmatprep.subr.mxu0 0.0
  %862 = vmatpush1.msra.mxu0 0.0
  %863 = vmatprep.subr.mxu0 0.0
  %864 = vmatpush1.msra.mxu0 0.0
  %865 = vmatprep.subr.mxu0 0.0
  %866 = vmatpush1.msra.mxu0 0.0
  %867 = vmatprep.subr.mxu0 0.0
  %868 = vmatpush1.msra.mxu0 0.0
  %869 = vmatprep.subr.mxu0 0.0
  %870 = vmatpush1.msra.mxu0 0.0
  %871 = vmatprep.subr.mxu0 0.0
  %872 = vmatpush1.msra.mxu0 %v725
  %873 = vmatprep.subr.mxu0 0.0
  %874 = vmatpush1.msra.mxu0 %v720
  %875 = vmatprep.subr.mxu0 0.0
  %876 = vmatpush2.msra.mxu0 0.0
  %877 = vmatprep.subr.mxu0 0.0
  %878 = vmatpush2.msra.mxu0 0.0
  %879 = vmatprep.subr.mxu0 0.0
  %880 = vmatpush2.msra.mxu0 0.0
  %881 = vmatprep.subr.mxu0 0.0
  %882 = vmatpush2.msra.mxu0 0.0
  %883 = vmatprep.subr.mxu0 0.0
  %884 = vmatpush2.msra.mxu0 0.0
  %885 = vmatprep.subr.mxu0 0.0
  %886 = vmatpush2.msra.mxu0 0.0
  %887 = vmatprep.subr.mxu0 0.0
  %888 = vmatpush2.msra.mxu0 0.0
  %889 = vmatprep.subr.mxu0 0.0
  %890 = vmatpush2.msra.mxu0 0.0
  %891 = vmatprep.subr.mxu0 0.0
  %892 = vmatpush2.msra.mxu0 0.0
  %893 = vmatprep.subr.mxu0 0.0
  %894 = vmatpush2.msra.mxu0 0.0
  %895 = vmatprep.subr.mxu0 0.0
  %896 = vmatpush2.msra.mxu0 0.0
  %897 = vmatprep.subr.mxu0 0.0
  %898 = vmatpush2.msra.mxu0 0.0
  %899 = vmatprep.subr.mxu0 0.0
  %900 = vmatpush2.msra.mxu0 0.0
  %901 = vmatprep.subr.mxu0 0.0
  %902 = vmatpush2.msra.mxu0 0.0
  %903 = vmatprep.subr.mxu0 0.0
  %904 = vmatpush2.msra.mxu0 0.0
  %905 = vmatprep.subr.mxu0 0.0
  %906 = vmatpush2.msra.mxu0 0.0
  %907 = vmatprep.mubr.f32.mxu0 0.0
  %908 = vmatmul.mubr.f32.gmra.mxu0 %v838
  %v909 = vpop.f32.mrf.mxu0
  %v910 = vadd.f32 0.0, %v909
  %v911 = vpop.f32.mrf.mxu0
  %912 = vmatprep.mubr.f32.mxu0 0.0
  %913 = vmatmul.mubr.f32.gmra.mxu0 %v841
  %v914 = vpop.f32.mrf.mxu0
  %v915 = vadd.f32 0.0, %v914
  %v916 = vpop.f32.mrf.mxu0
  %917 = vdwg.mxu0
  %v918 = vld [vmem:[%s3 + $0x8] sm:$0xff]
  %v920 = vsel %vm283, %v910, 0
  %v923 = vsel %vm283, %v915, 0
  %925 = vmatprep.subr.mxu0 0.0
  %926 = vmatpush1.msra.mxu0 0.0
  %927 = vmatprep.subr.mxu0 0.0
  %928 = vmatpush1.msra.mxu0 0.0
  %929 = vmatprep.subr.mxu0 0.0
  %930 = vmatpush1.msra.mxu0 0.0
  %931 = vmatprep.subr.mxu0 0.0
  %932 = vmatpush1.msra.mxu0 0.0
  %933 = vmatprep.subr.mxu0 0.0
  %934 = vmatpush1.msra.mxu0 0.0
  %935 = vmatprep.subr.mxu0 0.0
  %936 = vmatpush1.msra.mxu0 0.0
  %937 = vmatprep.subr.mxu0 0.0
  %938 = vmatpush1.msra.mxu0 0.0
  %939 = vmatprep.subr.mxu0 0.0
  %940 = vmatpush1.msra.mxu0 0.0
  %941 = vmatprep.subr.mxu0 0.0
  %942 = vmatpush1.msra.mxu0 0.0
  %943 = vmatprep.subr.mxu0 0.0
  %944 = vmatpush1.msra.mxu0 0.0
  %945 = vmatprep.subr.mxu0 0.0
  %946 = vmatpush1.msra.mxu0 0.0
  %947 = vmatprep.subr.mxu0 0.0
  %948 = vmatpush1.msra.mxu0 0.0
  %949 = vmatprep.subr.mxu0 0.0
  %950 = vmatpush1.msra.mxu0 0.0
  %951 = vmatprep.subr.mxu0 0.0
  %952 = vmatpush1.msra.mxu0 0.0
  %953 = vmatprep.subr.mxu0 0.0
  %954 = vmatpush1.msra.mxu0 0.0
  %955 = vmatprep.subr.mxu0 0.0
  %956 = vmatpush1.msra.mxu0 %v918
  %957 = vmatprep.subr.mxu0 0.0
  %958 = vmatpush2.msra.mxu0 0.0
  %959 = vmatprep.subr.mxu0 0.0
  %960 = vmatpush2.msra.mxu0 0.0
  %961 = vmatprep.subr.mxu0 0.0
  %962 = vmatpush2.msra.mxu0 0.0
  %963 = vmatprep.subr.mxu0 0.0
  %964 = vmatpush2.msra.mxu0 0.0
  %965 = vmatprep.subr.mxu0 0.0
  %966 = vmatpush2.msra.mxu0 0.0
  %967 = vmatprep.subr.mxu0 0.0
  %968 = vmatpush2.msra.mxu0 0.0
  %969 = vmatprep.subr.mxu0 0.0
  %970 = vmatpush2.msra.mxu0 0.0
  %971 = vmatprep.subr.mxu0 0.0
  %972 = vmatpush2.msra.mxu0 0.0
  %973 = vmatprep.subr.mxu0 0.0
  %974 = vmatpush2.msra.mxu0 0.0
  %975 = vmatprep.subr.mxu0 0.0
  %976 = vmatpush2.msra.mxu0 0.0
  %977 = vmatprep.subr.mxu0 0.0
  %978 = vmatpush2.msra.mxu0 0.0
  %979 = vmatprep.subr.mxu0 0.0
  %980 = vmatpush2.msra.mxu0 0.0
  %981 = vmatprep.subr.mxu0 0.0
  %982 = vmatpush2.msra.mxu0 0.0
  %983 = vmatprep.subr.mxu0 0.0
  %984 = vmatpush2.msra.mxu0 0.0
  %985 = vmatprep.subr.mxu0 0.0
  %986 = vmatpush2.msra.mxu0 0.0
  %987 = vmatprep.subr.mxu0 0.0
  %988 = vmatpush2.msra.mxu0 0.0
  %989 = vmatprep.mubr.f32.mxu0 0.0
  %990 = vmatmul.mubr.f32.gmra.mxu0 %v920
  %v991 = vpop.f32.mrf.mxu0
  %v992 = vadd.f32 0.0, %v991
  %v993 = vpop.f32.mrf.mxu0
  %994 = vmatprep.mubr.f32.mxu0 0.0
  %995 = vmatmul.mubr.f32.gmra.mxu0 %v923
  %v996 = vpop.f32.mrf.mxu0
  %v997 = vadd.f32 0.0, %v996
  %v998 = vpop.f32.mrf.mxu0
  %999 = vdwg.mxu0
  %v1001 = vsel %vm283, %v467, 0
  %v1004 = vsel %vm283, %v472, 0
  %1006 = vmatprep.subr.mxu0 0.0
  %1007 = vmatpush1.msra.mxu0 0.0
  %1008 = vmatprep.subr.mxu0 0.0
  %1009 = vmatpush1.msra.mxu0 0.0
  %1010 = vmatprep.subr.mxu0 0.0
  %1011 = vmatpush1.msra.mxu0 0.0
  %1012 = vmatprep.subr.mxu0 0.0
  %1013 = vmatpush1.msra.mxu0 0.0
  %1014 = vmatprep.subr.mxu0 0.0
  %1015 = vmatpush1.msra.mxu0 0.0
  %1016 = vmatprep.subr.mxu0 0.0
  %1017 = vmatpush1.msra.mxu0 0.0
  %1018 = vmatprep.subr.mxu0 0.0
  %1019 = vmatpush1.msra.mxu0 0.0
  %1020 = vmatprep.subr.mxu0 0.0
  %1021 = vmatpush1.msra.mxu0 0.0
  %1022 = vmatprep.subr.mxu0 0.0
  %1023 = vmatpush1.msra.mxu0 0.0
  %1024 = vmatprep.subr.mxu0 0.0
  %1025 = vmatpush1.msra.mxu0 0.0
  %1026 = vmatprep.subr.mxu0 0.0
  %1027 = vmatpush1.msra.mxu0 0.0
  %1028 = vmatprep.subr.mxu0 0.0
  %1029 = vmatpush1.msra.mxu0 0.0
  %1030 = vmatprep.subr.mxu0 0.0
  %1031 = vmatpush1.msra.mxu0 0.0
  %1032 = vmatprep.subr.mxu0 0.0
  %1033 = vmatpush1.msra.mxu0 0.0
  %1034 = vmatprep.subr.mxu0 0.0
  %1035 = vmatpush1.msra.mxu0 0.0
  %1036 = vmatprep.subr.mxu0 0.0
  %1037 = vmatpush1.msra.mxu0 %v475
  %1038 = vmatprep.subr.mxu0 0.0
  %1039 = vmatpush2.msra.mxu0 0.0
  %1040 = vmatprep.subr.mxu0 0.0
  %1041 = vmatpush2.msra.mxu0 0.0
  %1042 = vmatprep.subr.mxu0 0.0
  %1043 = vmatpush2.msra.mxu0 0.0
  %1044 = vmatprep.subr.mxu0 0.0
  %1045 = vmatpush2.msra.mxu0 0.0
  %1046 = vmatprep.subr.mxu0 0.0
  %1047 = vmatpush2.msra.mxu0 0.0
  %1048 = vmatprep.subr.mxu0 0.0
  %1049 = vmatpush2.msra.mxu0 0.0
  %1050 = vmatprep.subr.mxu0 0.0
  %1051 = vmatpush2.msra.mxu0 0.0
  %1052 = vmatprep.subr.mxu0 0.0
  %1053 = vmatpush2.msra.mxu0 0.0
  %1054 = vmatprep.subr.mxu0 0.0
  %1055 = vmatpush2.msra.mxu0 0.0
  %1056 = vmatprep.subr.mxu0 0.0
  %1057 = vmatpush2.msra.mxu0 0.0
  %1058 = vmatprep.subr.mxu0 0.0
  %1059 = vmatpush2.msra.mxu0 0.0
  %1060 = vmatprep.subr.mxu0 0.0
  %1061 = vmatpush2.msra.mxu0 0.0
  %1062 = vmatprep.subr.mxu0 0.0
  %1063 = vmatpush2.msra.mxu0 0.0
  %1064 = vmatprep.subr.mxu0 0.0
  %1065 = vmatpush2.msra.mxu0 0.0
  %1066 = vmatprep.subr.mxu0 0.0
  %1067 = vmatpush2.msra.mxu0 0.0
  %1068 = vmatprep.subr.mxu0 0.0
  %1069 = vmatpush2.msra.mxu0 0.0
  %1070 = vmatprep.mubr.f32.mxu0 0.0
  %1071 = vmatmul.mubr.f32.gmra.mxu0 %v1001
  %v1072 = vpop.f32.mrf.mxu0
  %v1073 = vadd.f32 %v992, %v1072
  %v1074 = vpop.f32.mrf.mxu0
  %1075 = vmatprep.mubr.f32.mxu0 0.0
  %1076 = vmatmul.mubr.f32.gmra.mxu0 %v1004
  %v1077 = vpop.f32.mrf.mxu0
  %v1078 = vadd.f32 %v997, %v1077
  %v1079 = vpop.f32.mrf.mxu0
  %1080 = vdwg.mxu0
  %s1081 = scalar_lea.vmem %s2, 80
  %v1082 = vld [vmem:[%s1081] sm:$0xff]
  %v1083 = vld [vmem:[%s1081 + $0x8] sm:$0xff]
  %v1084 = vld [vmem:[%s1081 + $0x10] sm:$0xff]
  %v1085 = vld [vmem:[%s1081 + $0x18] sm:$0xff]
  %v1086 = vld [vmem:[%s1081 + $0x20] sm:$0x1]
  %v1088 = vsel %vm36, %v1086, 0
  %1090 = vmatprep.subr.mxu0 0.0
  %1091 = vmatpush1.msra.mxu0 0.0
  %1092 = vmatprep.subr.mxu0 0.0
  %1093 = vmatpush1.msra.mxu0 0.0
  %1094 = vmatprep.subr.mxu0 0.0
  %1095 = vmatpush1.msra.mxu0 0.0
  %1096 = vmatprep.subr.mxu0 0.0
  %1097 = vmatpush1.msra.mxu0 0.0
  %1098 = vmatprep.subr.mxu0 0.0
  %1099 = vmatpush1.msra.mxu0 0.0
  %1100 = vmatprep.subr.mxu0 0.0
  %1101 = vmatpush1.msra.mxu0 0.0
  %1102 = vmatprep.subr.mxu0 0.0
  %1103 = vmatpush1.msra.mxu0 0.0
  %1104 = vmatprep.subr.mxu0 0.0
  %1105 = vmatpush1.msra.mxu0 0.0
  %1106 = vmatprep.subr.mxu0 0.0
  %1107 = vmatpush1.msra.mxu0 0.0
  %1108 = vmatprep.subr.mxu0 0.0
  %1109 = vmatpush1.msra.mxu0 0.0
  %1110 = vmatprep.subr.mxu0 0.0
  %1111 = vmatpush1.msra.mxu0 0.0
  %1112 = vmatprep.subr.mxu0 0.0
  %1113 = vmatpush1.msra.mxu0 %v1088
  %1114 = vmatprep.subr.mxu0 0.0
  %1115 = vmatpush1.msra.mxu0 %v1085
  %1116 = vmatprep.subr.mxu0 0.0
  %1117 = vmatpush1.msra.mxu0 %v1084
  %1118 = vmatprep.subr.mxu0 0.0
  %1119 = vmatpush1.msra.mxu0 %v1083
  %1120 = vmatprep.subr.mxu0 0.0
  %1121 = vmatpush1.msra.mxu0 %v1082
  %1122 = vmatprep.subr.mxu0 0.0
  %1123 = vmatpush2.msra.mxu0 0.0
  %1124 = vmatprep.subr.mxu0 0.0
  %1125 = vmatpush2.msra.mxu0 0.0
  %1126 = vmatprep.subr.mxu0 0.0
  %1127 = vmatpush2.msra.mxu0 0.0
  %1128 = vmatprep.subr.mxu0 0.0
  %1129 = vmatpush2.msra.mxu0 0.0
  %1130 = vmatprep.subr.mxu0 0.0
  %1131 = vmatpush2.msra.mxu0 0.0
  %1132 = vmatprep.subr.mxu0 0.0
  %1133 = vmatpush2.msra.mxu0 0.0
  %1134 = vmatprep.subr.mxu0 0.0
  %1135 = vmatpush2.msra.mxu0 0.0
  %1136 = vmatprep.subr.mxu0 0.0
  %1137 = vmatpush2.msra.mxu0 0.0
  %1138 = vmatprep.subr.mxu0 0.0
  %1139 = vmatpush2.msra.mxu0 0.0
  %1140 = vmatprep.subr.mxu0 0.0
  %1141 = vmatpush2.msra.mxu0 0.0
  %1142 = vmatprep.subr.mxu0 0.0
  %1143 = vmatpush2.msra.mxu0 0.0
  %1144 = vmatprep.subr.mxu0 0.0
  %1145 = vmatpush2.msra.mxu0 0.0
  %1146 = vmatprep.subr.mxu0 0.0
  %1147 = vmatpush2.msra.mxu0 0.0
  %1148 = vmatprep.subr.mxu0 0.0
  %1149 = vmatpush2.msra.mxu0 0.0
  %1150 = vmatprep.subr.mxu0 0.0
  %1151 = vmatpush2.msra.mxu0 0.0
  %1152 = vmatprep.subr.mxu0 0.0
  %1153 = vmatpush2.msra.mxu0 0.0
  %1154 = vmatprep.mubr.f32.mxu0 0.0
  %1155 = vmatmul.mubr.f32.gmra.mxu0 %v31
  %v1156 = vpop.f32.mrf.mxu0
  %v1157 = vadd.f32 0.0, %v1156
  %v1158 = vpop.f32.mrf.mxu0
  %1159 = vmatprep.mubr.f32.mxu0 0.0
  %1160 = vmatmul.mubr.f32.gmra.mxu0 %v34
  %v1161 = vpop.f32.mrf.mxu0
  %v1162 = vadd.f32 0.0, %v1161
  %v1163 = vpop.f32.mrf.mxu0
  %1164 = vdwg.mxu0
  %s1165 = scalar_lea.vmem %s2, 240
  %v1166 = vld [vmem:[%s1165] sm:$0xff]
  %v1167 = vld [vmem:[%s1165 + $0x8] sm:$0xff]
  %v1168 = vld [vmem:[%s1165 + $0x10] sm:$0xff]
  %v1169 = vld [vmem:[%s1165 + $0x18] sm:$0xff]
  %v1170 = vld [vmem:[%s1165 + $0x20] sm:$0x1]
  %v1172 = vsel %vm36, %v1170, 0
  %1174 = vmatprep.subr.mxu0 0.0
  %1175 = vmatpush1.msra.mxu0 0.0
  %1176 = vmatprep.subr.mxu0 0.0
  %1177 = vmatpush1.msra.mxu0 0.0
  %1178 = vmatprep.subr.mxu0 0.0
  %1179 = vmatpush1.msra.mxu0 0.0
  %1180 = vmatprep.subr.mxu0 0.0
  %1181 = vmatpush1.msra.mxu0 0.0
  %1182 = vmatprep.subr.mxu0 0.0
  %1183 = vmatpush1.msra.mxu0 0.0
  %1184 = vmatprep.subr.mxu0 0.0
  %1185 = vmatpush1.msra.mxu0 0.0
  %1186 = vmatprep.subr.mxu0 0.0
  %1187 = vmatpush1.msra.mxu0 0.0
  %1188 = vmatprep.subr.mxu0 0.0
  %1189 = vmatpush1.msra.mxu0 0.0
  %1190 = vmatprep.subr.mxu0 0.0
  %1191 = vmatpush1.msra.mxu0 0.0
  %1192 = vmatprep.subr.mxu0 0.0
  %1193 = vmatpush1.msra.mxu0 0.0
  %1194 = vmatprep.subr.mxu0 0.0
  %1195 = vmatpush1.msra.mxu0 0.0
  %1196 = vmatprep.subr.mxu0 0.0
  %1197 = vmatpush1.msra.mxu0 %v1172
  %1198 = vmatprep.subr.mxu0 0.0
  %1199 = vmatpush1.msra.mxu0 %v1169
  %1200 = vmatprep.subr.mxu0 0.0
  %1201 = vmatpush1.msra.mxu0 %v1168
  %1202 = vmatprep.subr.mxu0 0.0
  %1203 = vmatpush1.msra.mxu0 %v1167
  %1204 = vmatprep.subr.mxu0 0.0
  %1205 = vmatpush1.msra.mxu0 %v1166
  %1206 = vmatprep.subr.mxu0 0.0
  %1207 = vmatpush2.msra.mxu0 0.0
  %1208 = vmatprep.subr.mxu0 0.0
  %1209 = vmatpush2.msra.mxu0 0.0
  %1210 = vmatprep.subr.mxu0 0.0
  %1211 = vmatpush2.msra.mxu0 0.0
  %1212 = vmatprep.subr.mxu0 0.0
  %1213 = vmatpush2.msra.mxu0 0.0
  %1214 = vmatprep.subr.mxu0 0.0
  %1215 = vmatpush2.msra.mxu0 0.0
  %1216 = vmatprep.subr.mxu0 0.0
  %1217 = vmatpush2.msra.mxu0 0.0
  %1218 = vmatprep.subr.mxu0 0.0
  %1219 = vmatpush2.msra.mxu0 0.0
  %1220 = vmatprep.subr.mxu0 0.0
  %1221 = vmatpush2.msra.mxu0 0.0
  %1222 = vmatprep.subr.mxu0 0.0
  %1223 = vmatpush2.msra.mxu0 0.0
  %1224 = vmatprep.subr.mxu0 0.0
  %1225 = vmatpush2.msra.mxu0 0.0
  %1226 = vmatprep.subr.mxu0 0.0
  %1227 = vmatpush2.msra.mxu0 0.0
  %1228 = vmatprep.subr.mxu0 0.0
  %1229 = vmatpush2.msra.mxu0 0.0
  %1230 = vmatprep.subr.mxu0 0.0
  %1231 = vmatpush2.msra.mxu0 0.0
  %1232 = vmatprep.subr.mxu0 0.0
  %1233 = vmatpush2.msra.mxu0 0.0
  %1234 = vmatprep.subr.mxu0 0.0
  %1235 = vmatpush2.msra.mxu0 0.0
  %1236 = vmatprep.subr.mxu0 0.0
  %1237 = vmatpush2.msra.mxu0 0.0
  %1238 = vmatprep.mubr.f32.mxu0 0.0
  %1239 = vmatmul.mubr.f32.gmra.mxu0 %v31
  %v1240 = vpop.f32.mrf.mxu0
  %v1241 = vadd.f32 0.0, %v1240
  %v1242 = vpop.f32.mrf.mxu0
  %1243 = vmatprep.mubr.f32.mxu0 0.0
  %1244 = vmatmul.mubr.f32.gmra.mxu0 %v34
  %v1245 = vpop.f32.mrf.mxu0
  %v1246 = vadd.f32 0.0, %v1245
  %v1247 = vpop.f32.mrf.mxu0
  %1248 = vdwg.mxu0
  %s1249 = scalar_lea.vmem %s2, 400
  %v1250 = vld [vmem:[%s1249] sm:$0xff]
  %v1251 = vld [vmem:[%s1249 + $0x8] sm:$0xff]
  %v1252 = vld [vmem:[%s1249 + $0x10] sm:$0xff]
  %v1253 = vld [vmem:[%s1249 + $0x18] sm:$0xff]
  %v1254 = vld [vmem:[%s1249 + $0x20] sm:$0x1]
  %v1256 = vsel %vm36, %v1254, 0
  %1258 = vmatprep.subr.mxu0 0.0
  %1259 = vmatpush1.msra.mxu0 0.0
  %1260 = vmatprep.subr.mxu0 0.0
  %1261 = vmatpush1.msra.mxu0 0.0
  %1262 = vmatprep.subr.mxu0 0.0
  %1263 = vmatpush1.msra.mxu0 0.0
  %1264 = vmatprep.subr.mxu0 0.0
  %1265 = vmatpush1.msra.mxu0 0.0
  %1266 = vmatprep.subr.mxu0 0.0
  %1267 = vmatpush1.msra.mxu0 0.0
  %1268 = vmatprep.subr.mxu0 0.0
  %1269 = vmatpush1.msra.mxu0 0.0
  %1270 = vmatprep.subr.mxu0 0.0
  %1271 = vmatpush1.msra.mxu0 0.0
  %1272 = vmatprep.subr.mxu0 0.0
  %1273 = vmatpush1.msra.mxu0 0.0
  %1274 = vmatprep.subr.mxu0 0.0
  %1275 = vmatpush1.msra.mxu0 0.0
  %1276 = vmatprep.subr.mxu0 0.0
  %1277 = vmatpush1.msra.mxu0 0.0
  %1278 = vmatprep.subr.mxu0 0.0
  %1279 = vmatpush1.msra.mxu0 0.0
  %1280 = vmatprep.subr.mxu0 0.0
  %1281 = vmatpush1.msra.mxu0 %v1256
  %1282 = vmatprep.subr.mxu0 0.0
  %1283 = vmatpush1.msra.mxu0 %v1253
  %1284 = vmatprep.subr.mxu0 0.0
  %1285 = vmatpush1.msra.mxu0 %v1252
  %1286 = vmatprep.subr.mxu0 0.0
  %1287 = vmatpush1.msra.mxu0 %v1251
  %1288 = vmatprep.subr.mxu0 0.0
  %1289 = vmatpush1.msra.mxu0 %v1250
  %1290 = vmatprep.subr.mxu0 0.0
  %1291 = vmatpush2.msra.mxu0 0.0
  %1292 = vmatprep.subr.mxu0 0.0
  %1293 = vmatpush2.msra.mxu0 0.0
  %1294 = vmatprep.subr.mxu0 0.0
  %1295 = vmatpush2.msra.mxu0 0.0
  %1296 = vmatprep.subr.mxu0 0.0
  %1297 = vmatpush2.msra.mxu0 0.0
  %1298 = vmatprep.subr.mxu0 0.0
  %1299 = vmatpush2.msra.mxu0 0.0
  %1300 = vmatprep.subr.mxu0 0.0
  %1301 = vmatpush2.msra.mxu0 0.0
  %1302 = vmatprep.subr.mxu0 0.0
  %1303 = vmatpush2.msra.mxu0 0.0
  %1304 = vmatprep.subr.mxu0 0.0
  %1305 = vmatpush2.msra.mxu0 0.0
  %1306 = vmatprep.subr.mxu0 0.0
  %1307 = vmatpush2.msra.mxu0 0.0
  %1308 = vmatprep.subr.mxu0 0.0
  %1309 = vmatpush2.msra.mxu0 0.0
  %1310 = vmatprep.subr.mxu0 0.0
  %1311 = vmatpush2.msra.mxu0 0.0
  %1312 = vmatprep.subr.mxu0 0.0
  %1313 = vmatpush2.msra.mxu0 0.0
  %1314 = vmatprep.subr.mxu0 0.0
  %1315 = vmatpush2.msra.mxu0 0.0
  %1316 = vmatprep.subr.mxu0 0.0
  %1317 = vmatpush2.msra.mxu0 0.0
  %1318 = vmatprep.subr.mxu0 0.0
  %1319 = vmatpush2.msra.mxu0 0.0
  %1320 = vmatprep.subr.mxu0 0.0
  %1321 = vmatpush2.msra.mxu0 0.0
  %1322 = vmatprep.mubr.f32.mxu0 0.0
  %1323 = vmatmul.mubr.f32.gmra.mxu0 %v31
  %v1324 = vpop.f32.mrf.mxu0
  %v1325 = vadd.f32 0.0, %v1324
  %v1326 = vpop.f32.mrf.mxu0
  %1327 = vmatprep.mubr.f32.mxu0 0.0
  %1328 = vmatmul.mubr.f32.gmra.mxu0 %v34
  %v1329 = vpop.f32.mrf.mxu0
  %v1330 = vadd.f32 0.0, %v1329
  %v1331 = vpop.f32.mrf.mxu0
  %1332 = vdwg.mxu0
  %v1334 = vsel %vm283, %v1157, 0
  %v1337 = vsel %vm283, %v1162, 0
  %v1340 = vsel %vm283, %v1241, 0
  %v1343 = vsel %vm283, %v1246, 0
  %1345 = vmatprep.subr.mxu0 0.0
  %1346 = vmatpush1.xpose.msra.mxu0 0.0
  %1347 = vmatprep.subr.mxu0 0.0
  %1348 = vmatpush1.xpose.msra.mxu0 0.0
  %1349 = vmatprep.subr.mxu0 0.0
  %1350 = vmatpush1.xpose.msra.mxu0 0.0
  %1351 = vmatprep.subr.mxu0 0.0
  %1352 = vmatpush1.xpose.msra.mxu0 0.0
  %1353 = vmatprep.subr.mxu0 0.0
  %1354 = vmatpush1.xpose.msra.mxu0 0.0
  %1355 = vmatprep.subr.mxu0 0.0
  %1356 = vmatpush1.xpose.msra.mxu0 0.0
  %1357 = vmatprep.subr.mxu0 0.0
  %1358 = vmatpush1.xpose.msra.mxu0 0.0
  %1359 = vmatprep.subr.mxu0 0.0
  %1360 = vmatpush1.xpose.msra.mxu0 0.0
  %1361 = vmatprep.subr.mxu0 0.0
  %1362 = vmatpush1.xpose.msra.mxu0 0.0
  %1363 = vmatprep.subr.mxu0 0.0
  %1364 = vmatpush1.xpose.msra.mxu0 0.0
  %1365 = vmatprep.subr.mxu0 0.0
  %1366 = vmatpush1.xpose.msra.mxu0 0.0
  %1367 = vmatprep.subr.mxu0 0.0
  %1368 = vmatpush1.xpose.msra.mxu0 0.0
  %1369 = vmatprep.subr.mxu0 0.0
  %1370 = vmatpush1.xpose.msra.mxu0 0.0
  %1371 = vmatprep.subr.mxu0 0.0
  %1372 = vmatpush1.xpose.msra.mxu0 0.0
  %1373 = vmatprep.subr.mxu0 0.0
  %1374 = vmatpush1.xpose.msra.mxu0 %v1343
  %1375 = vmatprep.subr.mxu0 0.0
  %1376 = vmatpush1.xpose.msra.mxu0 %v1340
  %1377 = vmatprep.subr.mxu0 0.0
  %1378 = vmatpush2.xpose.msra.mxu0 0.0
  %1379 = vmatprep.subr.mxu0 0.0
  %1380 = vmatpush2.xpose.msra.mxu0 0.0
  %1381 = vmatprep.subr.mxu0 0.0
  %1382 = vmatpush2.xpose.msra.mxu0 0.0
  %1383 = vmatprep.subr.mxu0 0.0
  %1384 = vmatpush2.xpose.msra.mxu0 0.0
  %1385 = vmatprep.subr.mxu0 0.0
  %1386 = vmatpush2.xpose.msra.mxu0 0.0
  %1387 = vmatprep.subr.mxu0 0.0
  %1388 = vmatpush2.xpose.msra.mxu0 0.0
  %1389 = vmatprep.subr.mxu0 0.0
  %1390 = vmatpush2.xpose.msra.mxu0 0.0
  %1391 = vmatprep.subr.mxu0 0.0
  %1392 = vmatpush2.xpose.msra.mxu0 0.0
  %1393 = vmatprep.subr.mxu0 0.0
  %1394 = vmatpush2.xpose.msra.mxu0 0.0
  %1395 = vmatprep.subr.mxu0 0.0
  %1396 = vmatpush2.xpose.msra.mxu0 0.0
  %1397 = vmatprep.subr.mxu0 0.0
  %1398 = vmatpush2.xpose.msra.mxu0 0.0
  %1399 = vmatprep.subr.mxu0 0.0
  %1400 = vmatpush2.xpose.msra.mxu0 0.0
  %1401 = vmatprep.subr.mxu0 0.0
  %1402 = vmatpush2.xpose.msra.mxu0 0.0
  %1403 = vmatprep.subr.mxu0 0.0
  %1404 = vmatpush2.xpose.msra.mxu0 0.0
  %1405 = vmatprep.subr.mxu0 0.0
  %1406 = vmatpush2.xpose.msra.mxu0 0.0
  %1407 = vmatprep.subr.mxu0 0.0
  %1408 = vmatpush2.xpose.msra.mxu0 0.0
  %1409 = vmatprep.mubr.f32.mxu0 0.0
  %1410 = vmatmul.mubr.f32.gmra.mxu0 %v1334
  %v1411 = vpop.f32.mrf.mxu0
  %v1412 = vadd.f32 %v22, %v1411
  %v1413 = vpop.f32.mrf.mxu0
  %1414 = vmatprep.mubr.f32.mxu0 0.0
  %1415 = vmatmul.mubr.f32.gmra.mxu0 %v1337
  %v1416 = vpop.f32.mrf.mxu0
  %v1417 = vadd.f32 %v23, %v1416
  %v1418 = vpop.f32.mrf.mxu0
  %1419 = vdwg.mxu0
  %v1420 = vsel %vm371, %v1412, -inf
  %1421 = vmax.xlane.f32.xlu0 %v1420
  %v1422 = vpop.xlane.xlu0 %1421
  %v1423 = vsel %vm371, %v1417, -inf
  %1424 = vmax.xlane.f32.xlu0 %v1423
  %v1425 = vpop.xlane.xlu0 %1424
  %v1426 = vsub.f32 %v1412, %v1422
  %v1427 = vsub.f32 %v1417, %v1425
  %v1428 = vmul.f32 %v1426, 1.442695
  %v1429 = vpow.pop %v1428
  %v1430 = vmul.f32 %v1427, 1.442695
  %v1431 = vpow.pop %v1430
  %v1432 = vsel %vm371, %v1429, 0.0
  %1433 = vadd.xlane.f32.xlu0 %v1432
  %v1434 = vpop.xlane.xlu0 %1433
  %v1435 = vsel %vm371, %v1431, 0.0
  %1436 = vadd.xlane.f32.xlu0 %v1435
  %v1437 = vpop.xlane.xlu0 %1436
  %v1438 = vrcp.pop %v1434
  %v1439 = vmul.f32 %v1429, %v1438
  %v1440 = vrcp.pop %v1437
  %v1441 = vmul.f32 %v1431, %v1440
  %v1443 = vsel %vm371, %v1439, 0
  %v1446 = vsel %vm371, %v1441, 0
  %1448 = vmatprep.subr.mxu0 0.0
  %1449 = vmatpush1.msra.mxu0 0.0
  %1450 = vmatprep.subr.mxu0 0.0
  %1451 = vmatpush1.msra.mxu0 0.0
  %1452 = vmatprep.subr.mxu0 0.0
  %1453 = vmatpush1.msra.mxu0 0.0
  %1454 = vmatprep.subr.mxu0 0.0
  %1455 = vmatpush1.msra.mxu0 0.0
  %1456 = vmatprep.subr.mxu0 0.0
  %1457 = vmatpush1.msra.mxu0 0.0
  %1458 = vmatprep.subr.mxu0 0.0
  %1459 = vmatpush1.msra.mxu0 0.0
  %1460 = vmatprep.subr.mxu0 0.0
  %1461 = vmatpush1.msra.mxu0 0.0
  %1462 = vmatprep.subr.mxu0 0.0
  %1463 = vmatpush1.msra.mxu0 0.0
  %1464 = vmatprep.subr.mxu0 0.0
  %1465 = vmatpush1.msra.mxu0 0.0
  %1466 = vmatprep.subr.mxu0 0.0
  %1467 = vmatpush1.msra.mxu0 0.0
  %1468 = vmatprep.subr.mxu0 0.0
  %1469 = vmatpush1.msra.mxu0 0.0
  %1470 = vmatprep.subr.mxu0 0.0
  %1471 = vmatpush1.msra.mxu0 0.0
  %1472 = vmatprep.subr.mxu0 0.0
  %1473 = vmatpush1.msra.mxu0 0.0
  %1474 = vmatprep.subr.mxu0 0.0
  %1475 = vmatpush1.msra.mxu0 0.0
  %1476 = vmatprep.subr.mxu0 0.0
  %1477 = vmatpush1.msra.mxu0 %v1330
  %1478 = vmatprep.subr.mxu0 0.0
  %1479 = vmatpush1.msra.mxu0 %v1325
  %1480 = vmatprep.subr.mxu0 0.0
  %1481 = vmatpush2.msra.mxu0 0.0
  %1482 = vmatprep.subr.mxu0 0.0
  %1483 = vmatpush2.msra.mxu0 0.0
  %1484 = vmatprep.subr.mxu0 0.0
  %1485 = vmatpush2.msra.mxu0 0.0
  %1486 = vmatprep.subr.mxu0 0.0
  %1487 = vmatpush2.msra.mxu0 0.0
  %1488 = vmatprep.subr.mxu0 0.0
  %1489 = vmatpush2.msra.mxu0 0.0
  %1490 = vmatprep.subr.mxu0 0.0
  %1491 = vmatpush2.msra.mxu0 0.0
  %1492 = vmatprep.subr.mxu0 0.0
  %1493 = vmatpush2.msra.mxu0 0.0
  %1494 = vmatprep.subr.mxu0 0.0
  %1495 = vmatpush2.msra.mxu0 0.0
  %1496 = vmatprep.subr.mxu0 0.0
  %1497 = vmatpush2.msra.mxu0 0.0
  %1498 = vmatprep.subr.mxu0 0.0
  %1499 = vmatpush2.msra.mxu0 0.0
  %1500 = vmatprep.subr.mxu0 0.0
  %1501 = vmatpush2.msra.mxu0 0.0
  %1502 = vmatprep.subr.mxu0 0.0
  %1503 = vmatpush2.msra.mxu0 0.0
  %1504 = vmatprep.subr.mxu0 0.0
  %1505 = vmatpush2.msra.mxu0 0.0
  %1506 = vmatprep.subr.mxu0 0.0
  %1507 = vmatpush2.msra.mxu0 0.0
  %1508 = vmatprep.subr.mxu0 0.0
  %1509 = vmatpush2.msra.mxu0 0.0
  %1510 = vmatprep.subr.mxu0 0.0
  %1511 = vmatpush2.msra.mxu0 0.0
  %1512 = vmatprep.mubr.f32.mxu0 0.0
  %1513 = vmatmul.mubr.f32.gmra.mxu0 %v1443
  %v1514 = vpop.f32.mrf.mxu0
  %v1515 = vadd.f32 0.0, %v1514
  %v1516 = vpop.f32.mrf.mxu0
  %1517 = vmatprep.mubr.f32.mxu0 0.0
  %1518 = vmatmul.mubr.f32.gmra.mxu0 %v1446
  %v1519 = vpop.f32.mrf.mxu0
  %v1520 = vadd.f32 0.0, %v1519
  %v1521 = vpop.f32.mrf.mxu0
  %1522 = vdwg.mxu0
  %v1523 = vld [vmem:[%s3 + $0x10] sm:$0xff]
  %v1525 = vsel %vm283, %v1515, 0
  %v1528 = vsel %vm283, %v1520, 0
  %1530 = vmatprep.subr.mxu0 0.0
  %1531 = vmatpush1.msra.mxu0 0.0
  %1532 = vmatprep.subr.mxu0 0.0
  %1533 = vmatpush1.msra.mxu0 0.0
  %1534 = vmatprep.subr.mxu0 0.0
  %1535 = vmatpush1.msra.mxu0 0.0
  %1536 = vmatprep.subr.mxu0 0.0
  %1537 = vmatpush1.msra.mxu0 0.0
  %1538 = vmatprep.subr.mxu0 0.0
  %1539 = vmatpush1.msra.mxu0 0.0
  %1540 = vmatprep.subr.mxu0 0.0
  %1541 = vmatpush1.msra.mxu0 0.0
  %1542 = vmatprep.subr.mxu0 0.0
  %1543 = vmatpush1.msra.mxu0 0.0
  %1544 = vmatprep.subr.mxu0 0.0
  %1545 = vmatpush1.msra.mxu0 0.0
  %1546 = vmatprep.subr.mxu0 0.0
  %1547 = vmatpush1.msra.mxu0 0.0
  %1548 = vmatprep.subr.mxu0 0.0
  %1549 = vmatpush1.msra.mxu0 0.0
  %1550 = vmatprep.subr.mxu0 0.0
  %1551 = vmatpush1.msra.mxu0 0.0
  %1552 = vmatprep.subr.mxu0 0.0
  %1553 = vmatpush1.msra.mxu0 0.0
  %1554 = vmatprep.subr.mxu0 0.0
  %1555 = vmatpush1.msra.mxu0 0.0
  %1556 = vmatprep.subr.mxu0 0.0
  %1557 = vmatpush1.msra.mxu0 0.0
  %1558 = vmatprep.subr.mxu0 0.0
  %1559 = vmatpush1.msra.mxu0 0.0
  %1560 = vmatprep.subr.mxu0 0.0
  %1561 = vmatpush1.msra.mxu0 %v1523
  %1562 = vmatprep.subr.mxu0 0.0
  %1563 = vmatpush2.msra.mxu0 0.0
  %1564 = vmatprep.subr.mxu0 0.0
  %1565 = vmatpush2.msra.mxu0 0.0
  %1566 = vmatprep.subr.mxu0 0.0
  %1567 = vmatpush2.msra.mxu0 0.0
  %1568 = vmatprep.subr.mxu0 0.0
  %1569 = vmatpush2.msra.mxu0 0.0
  %1570 = vmatprep.subr.mxu0 0.0
  %1571 = vmatpush2.msra.mxu0 0.0
  %1572 = vmatprep.subr.mxu0 0.0
  %1573 = vmatpush2.msra.mxu0 0.0
  %1574 = vmatprep.subr.mxu0 0.0
  %1575 = vmatpush2.msra.mxu0 0.0
  %1576 = vmatprep.subr.mxu0 0.0
  %1577 = vmatpush2.msra.mxu0 0.0
  %1578 = vmatprep.subr.mxu0 0.0
  %1579 = vmatpush2.msra.mxu0 0.0
  %1580 = vmatprep.subr.mxu0 0.0
  %1581 = vmatpush2.msra.mxu0 0.0
  %1582 = vmatprep.subr.mxu0 0.0
  %1583 = vmatpush2.msra.mxu0 0.0
  %1584 = vmatprep.subr.mxu0 0.0
  %1585 = vmatpush2.msra.mxu0 0.0
  %1586 = vmatprep.subr.mxu0 0.0
  %1587 = vmatpush2.msra.mxu0 0.0
  %1588 = vmatprep.subr.mxu0 0.0
  %1589 = vmatpush2.msra.mxu0 0.0
  %1590 = vmatprep.subr.mxu0 0.0
  %1591 = vmatpush2.msra.mxu0 0.0
  %1592 = vmatprep.subr.mxu0 0.0
  %1593 = vmatpush2.msra.mxu0 0.0
  %1594 = vmatprep.mubr.f32.mxu0 0.0
  %1595 = vmatmul.mubr.f32.gmra.mxu0 %v1525
  %v1596 = vpop.f32.mrf.mxu0
  %v1597 = vadd.f32 0.0, %v1596
  %v1598 = vpop.f32.mrf.mxu0
  %1599 = vmatprep.mubr.f32.mxu0 0.0
  %1600 = vmatmul.mubr.f32.gmra.mxu0 %v1528
  %v1601 = vpop.f32.mrf.mxu0
  %v1602 = vadd.f32 0.0, %v1601
  %v1603 = vpop.f32.mrf.mxu0
  %1604 = vdwg.mxu0
  %v1605 = vadd.f32 %v1073, %v1597
  %v1606 = vadd.f32 %v1078, %v1602
  %s1607 = scalar_lea.vmem %s2, 120
  %v1608 = vld [vmem:[%s1607] sm:$0xff]
  %v1609 = vld [vmem:[%s1607 + $0x8] sm:$0xff]
  %v1610 = vld [vmem:[%s1607 + $0x10] sm:$0xff]
  %v1611 = vld [vmem:[%s1607 + $0x18] sm:$0xff]
  %v1612 = vld [vmem:[%s1607 + $0x20] sm:$0x1]
  %v1614 = vsel %vm36, %v1612, 0
  %1616 = vmatprep.subr.mxu0 0.0
  %1617 = vmatpush1.msra.mxu0 0.0
  %1618 = vmatprep.subr.mxu0 0.0
  %1619 = vmatpush1.msra.mxu0 0.0
  %1620 = vmatprep.subr.mxu0 0.0
  %1621 = vmatpush1.msra.mxu0 0.0
  %1622 = vmatprep.subr.mxu0 0.0
  %1623 = vmatpush1.msra.mxu0 0.0
  %1624 = vmatprep.subr.mxu0 0.0
  %1625 = vmatpush1.msra.mxu0 0.0
  %1626 = vmatprep.subr.mxu0 0.0
  %1627 = vmatpush1.msra.mxu0 0.0
  %1628 = vmatprep.subr.mxu0 0.0
  %1629 = vmatpush1.msra.mxu0 0.0
  %1630 = vmatprep.subr.mxu0 0.0
  %1631 = vmatpush1.msra.mxu0 0.0
  %1632 = vmatprep.subr.mxu0 0.0
  %1633 = vmatpush1.msra.mxu0 0.0
  %1634 = vmatprep.subr.mxu0 0.0
  %1635 = vmatpush1.msra.mxu0 0.0
  %1636 = vmatprep.subr.mxu0 0.0
  %1637 = vmatpush1.msra.mxu0 0.0
  %1638 = vmatprep.subr.mxu0 0.0
  %1639 = vmatpush1.msra.mxu0 %v1614
  %1640 = vmatprep.subr.mxu0 0.0
  %1641 = vmatpush1.msra.mxu0 %v1611
  %1642 = vmatprep.subr.mxu0 0.0
  %1643 = vmatpush1.msra.mxu0 %v1610
  %1644 = vmatprep.subr.mxu0 0.0
  %1645 = vmatpush1.msra.mxu0 %v1609
  %1646 = vmatprep.subr.mxu0 0.0
  %1647 = vmatpush1.msra.mxu0 %v1608
  %1648 = vmatprep.subr.mxu0 0.0
  %1649 = vmatpush2.msra.mxu0 0.0
  %1650 = vmatprep.subr.mxu0 0.0
  %1651 = vmatpush2.msra.mxu0 0.0
  %1652 = vmatprep.subr.mxu0 0.0
  %1653 = vmatpush2.msra.mxu0 0.0
  %1654 = vmatprep.subr.mxu0 0.0
  %1655 = vmatpush2.msra.mxu0 0.0
  %1656 = vmatprep.subr.mxu0 0.0
  %1657 = vmatpush2.msra.mxu0 0.0
  %1658 = vmatprep.subr.mxu0 0.0
  %1659 = vmatpush2.msra.mxu0 0.0
  %1660 = vmatprep.subr.mxu0 0.0
  %1661 = vmatpush2.msra.mxu0 0.0
  %1662 = vmatprep.subr.mxu0 0.0
  %1663 = vmatpush2.msra.mxu0 0.0
  %1664 = vmatprep.subr.mxu0 0.0
  %1665 = vmatpush2.msra.mxu0 0.0
  %1666 = vmatprep.subr.mxu0 0.0
  %1667 = vmatpush2.msra.mxu0 0.0
  %1668 = vmatprep.subr.mxu0 0.0
  %1669 = vmatpush2.msra.mxu0 0.0
  %1670 = vmatprep.subr.mxu0 0.0
  %1671 = vmatpush2.msra.mxu0 0.0
  %1672 = vmatprep.subr.mxu0 0.0
  %1673 = vmatpush2.msra.mxu0 0.0
  %1674 = vmatprep.subr.mxu0 0.0
  %1675 = vmatpush2.msra.mxu0 0.0
  %1676 = vmatprep.subr.mxu0 0.0
  %1677 = vmatpush2.msra.mxu0 0.0
  %1678 = vmatprep.subr.mxu0 0.0
  %1679 = vmatpush2.msra.mxu0 0.0
  %1680 = vmatprep.mubr.f32.mxu0 0.0
  %1681 = vmatmul.mubr.f32.gmra.mxu0 %v31
  %v1682 = vpop.f32.mrf.mxu0
  %v1683 = vadd.f32 0.0, %v1682
  %v1684 = vpop.f32.mrf.mxu0
  %1685 = vmatprep.mubr.f32.mxu0 0.0
  %1686 = vmatmul.mubr.f32.gmra.mxu0 %v34
  %v1687 = vpop.f32.mrf.mxu0
  %v1688 = vadd.f32 0.0, %v1687
  %v1689 = vpop.f32.mrf.mxu0
  %1690 = vdwg.mxu0
  %s1691 = scalar_lea.vmem %s2, 280
  %v1692 = vld [vmem:[%s1691] sm:$0xff]
  %v1693 = vld [vmem:[%s1691 + $0x8] sm:$0xff]
  %v1694 = vld [vmem:[%s1691 + $0x10] sm:$0xff]
  %v1695 = vld [vmem:[%s1691 + $0x18] sm:$0xff]
  %v1696 = vld [vmem:[%s1691 + $0x20] sm:$0x1]
  %v1698 = vsel %vm36, %v1696, 0
  %1700 = vmatprep.subr.mxu0 0.0
  %1701 = vmatpush1.msra.mxu0 0.0
  %1702 = vmatprep.subr.mxu0 0.0
  %1703 = vmatpush1.msra.mxu0 0.0
  %1704 = vmatprep.subr.mxu0 0.0
  %1705 = vmatpush1.msra.mxu0 0.0
  %1706 = vmatprep.subr.mxu0 0.0
  %1707 = vmatpush1.msra.mxu0 0.0
  %1708 = vmatprep.subr.mxu0 0.0
  %1709 = vmatpush1.msra.mxu0 0.0
  %1710 = vmatprep.subr.mxu0 0.0
  %1711 = vmatpush1.msra.mxu0 0.0
  %1712 = vmatprep.subr.mxu0 0.0
  %1713 = vmatpush1.msra.mxu0 0.0
  %1714 = vmatprep.subr.mxu0 0.0
  %1715 = vmatpush1.msra.mxu0 0.0
  %1716 = vmatprep.subr.mxu0 0.0
  %1717 = vmatpush1.msra.mxu0 0.0
  %1718 = vmatprep.subr.mxu0 0.0
  %1719 = vmatpush1.msra.mxu0 0.0
  %1720 = vmatprep.subr.mxu0 0.0
  %1721 = vmatpush1.msra.mxu0 0.0
  %1722 = vmatprep.subr.mxu0 0.0
  %1723 = vmatpush1.msra.mxu0 %v1698
  %1724 = vmatprep.subr.mxu0 0.0
  %1725 = vmatpush1.msra.mxu0 %v1695
  %1726 = vmatprep.subr.mxu0 0.0
  %1727 = vmatpush1.msra.mxu0 %v1694
  %1728 = vmatprep.subr.mxu0 0.0
  %1729 = vmatpush1.msra.mxu0 %v1693
  %1730 = vmatprep.subr.mxu0 0.0
  %1731 = vmatpush1.msra.mxu0 %v1692
  %1732 = vmatprep.subr.mxu0 0.0
  %1733 = vmatpush2.msra.mxu0 0.0
  %1734 = vmatprep.subr.mxu0 0.0
  %1735 = vmatpush2.msra.mxu0 0.0
  %1736 = vmatprep.subr.mxu0 0.0
  %1737 = vmatpush2.msra.mxu0 0.0
  %1738 = vmatprep.subr.mxu0 0.0
  %1739 = vmatpush2.msra.mxu0 0.0
  %1740 = vmatprep.subr.mxu0 0.0
  %1741 = vmatpush2.msra.mxu0 0.0
  %1742 = vmatprep.subr.mxu0 0.0
  %1743 = vmatpush2.msra.mxu0 0.0
  %1744 = vmatprep.subr.mxu0 0.0
  %1745 = vmatpush2.msra.mxu0 0.0
  %1746 = vmatprep.subr.mxu0 0.0
  %1747 = vmatpush2.msra.mxu0 0.0
  %1748 = vmatprep.subr.mxu0 0.0
  %1749 = vmatpush2.msra.mxu0 0.0
  %1750 = vmatprep.subr.mxu0 0.0
  %1751 = vmatpush2.msra.mxu0 0.0
  %1752 = vmatprep.subr.mxu0 0.0
  %1753 = vmatpush2.msra.mxu0 0.0
  %1754 = vmatprep.subr.mxu0 0.0
  %1755 = vmatpush2.msra.mxu0 0.0
  %1756 = vmatprep.subr.mxu0 0.0
  %1757 = vmatpush2.msra.mxu0 0.0
  %1758 = vmatprep.subr.mxu0 0.0
  %1759 = vmatpush2.msra.mxu0 0.0
  %1760 = vmatprep.subr.mxu0 0.0
  %1761 = vmatpush2.msra.mxu0 0.0
  %1762 = vmatprep.subr.mxu0 0.0
  %1763 = vmatpush2.msra.mxu0 0.0
  %1764 = vmatprep.mubr.f32.mxu0 0.0
  %1765 = vmatmul.mubr.f32.gmra.mxu0 %v31
  %v1766 = vpop.f32.mrf.mxu0
  %v1767 = vadd.f32 0.0, %v1766
  %v1768 = vpop.f32.mrf.mxu0
  %1769 = vmatprep.mubr.f32.mxu0 0.0
  %1770 = vmatmul.mubr.f32.gmra.mxu0 %v34
  %v1771 = vpop.f32.mrf.mxu0
  %v1772 = vadd.f32 0.0, %v1771
  %v1773 = vpop.f32.mrf.mxu0
  %1774 = vdwg.mxu0
  %s1775 = scalar_lea.vmem %s2, 440
  %v1776 = vld [vmem:[%s1775] sm:$0xff]
  %v1777 = vld [vmem:[%s1775 + $0x8] sm:$0xff]
  %v1778 = vld [vmem:[%s1775 + $0x10] sm:$0xff]
  %v1779 = vld [vmem:[%s1775 + $0x18] sm:$0xff]
  %v1780 = vld [vmem:[%s1775 + $0x20] sm:$0x1]
  %v1782 = vsel %vm36, %v1780, 0
  %1784 = vmatprep.subr.mxu0 0.0
  %1785 = vmatpush1.msra.mxu0 0.0
  %1786 = vmatprep.subr.mxu0 0.0
  %1787 = vmatpush1.msra.mxu0 0.0
  %1788 = vmatprep.subr.mxu0 0.0
  %1789 = vmatpush1.msra.mxu0 0.0
  %1790 = vmatprep.subr.mxu0 0.0
  %1791 = vmatpush1.msra.mxu0 0.0
  %1792 = vmatprep.subr.mxu0 0.0
  %1793 = vmatpush1.msra.mxu0 0.0
  %1794 = vmatprep.subr.mxu0 0.0
  %1795 = vmatpush1.msra.mxu0 0.0
  %1796 = vmatprep.subr.mxu0 0.0
  %1797 = vmatpush1.msra.mxu0 0.0
  %1798 = vmatprep.subr.mxu0 0.0
  %1799 = vmatpush1.msra.mxu0 0.0
  %1800 = vmatprep.subr.mxu0 0.0
  %1801 = vmatpush1.msra.mxu0 0.0
  %1802 = vmatprep.subr.mxu0 0.0
  %1803 = vmatpush1.msra.mxu0 0.0
  %1804 = vmatprep.subr.mxu0 0.0
  %1805 = vmatpush1.msra.mxu0 0.0
  %1806 = vmatprep.subr.mxu0 0.0
  %1807 = vmatpush1.msra.mxu0 %v1782
  %1808 = vmatprep.subr.mxu0 0.0
  %1809 = vmatpush1.msra.mxu0 %v1779
  %1810 = vmatprep.subr.mxu0 0.0
  %1811 = vmatpush1.msra.mxu0 %v1778
  %1812 = vmatprep.subr.mxu0 0.0
  %1813 = vmatpush1.msra.mxu0 %v1777
  %1814 = vmatprep.subr.mxu0 0.0
  %1815 = vmatpush1.msra.mxu0 %v1776
  %1816 = vmatprep.subr.mxu0 0.0
  %1817 = vmatpush2.msra.mxu0 0.0
  %1818 = vmatprep.subr.mxu0 0.0
  %1819 = vmatpush2.msra.mxu0 0.0
  %1820 = vmatprep.subr.mxu0 0.0
  %1821 = vmatpush2.msra.mxu0 0.0
  %1822 = vmatprep.subr.mxu0 0.0
  %1823 = vmatpush2.msra.mxu0 0.0
  %1824 = vmatprep.subr.mxu0 0.0
  %1825 = vmatpush2.msra.mxu0 0.0
  %1826 = vmatprep.subr.mxu0 0.0
  %1827 = vmatpush2.msra.mxu0 0.0
  %1828 = vmatprep.subr.mxu0 0.0
  %1829 = vmatpush2.msra.mxu0 0.0
  %1830 = vmatprep.subr.mxu0 0.0
  %1831 = vmatpush2.msra.mxu0 0.0
  %1832 = vmatprep.subr.mxu0 0.0
  %1833 = vmatpush2.msra.mxu0 0.0
  %1834 = vmatprep.subr.mxu0 0.0
  %1835 = vmatpush2.msra.mxu0 0.0
  %1836 = vmatprep.subr.mxu0 0.0
  %1837 = vmatpush2.msra.mxu0 0.0
  %1838 = vmatprep.subr.mxu0 0.0
  %1839 = vmatpush2.msra.mxu0 0.0
  %1840 = vmatprep.subr.mxu0 0.0
  %1841 = vmatpush2.msra.mxu0 0.0
  %1842 = vmatprep.subr.mxu0 0.0
  %1843 = vmatpush2.msra.mxu0 0.0
  %1844 = vmatprep.subr.mxu0 0.0
  %1845 = vmatpush2.msra.mxu0 0.0
  %1846 = vmatprep.subr.mxu0 0.0
  %1847 = vmatpush2.msra.mxu0 0.0
  %1848 = vmatprep.mubr.f32.mxu0 0.0
  %1849 = vmatmul.mubr.f32.gmra.mxu0 %v31
  %v1850 = vpop.f32.mrf.mxu0
  %v1851 = vadd.f32 0.0, %v1850
  %v1852 = vpop.f32.mrf.mxu0
  %1853 = vmatprep.mubr.f32.mxu0 0.0
  %1854 = vmatmul.mubr.f32.gmra.mxu0 %v34
  %v1855 = vpop.f32.mrf.mxu0
  %v1856 = vadd.f32 0.0, %v1855
  %v1857 = vpop.f32.mrf.mxu0
  %1858 = vdwg.mxu0
  %v1860 = vsel %vm283, %v1683, 0
  %v1863 = vsel %vm283, %v1688, 0
  %v1866 = vsel %vm283, %v1767, 0
  %v1869 = vsel %vm283, %v1772, 0
  %1871 = vmatprep.subr.mxu0 0.0
  %1872 = vmatpush1.xpose.msra.mxu0 0.0
  %1873 = vmatprep.subr.mxu0 0.0
  %1874 = vmatpush1.xpose.msra.mxu0 0.0
  %1875 = vmatprep.subr.mxu0 0.0
  %1876 = vmatpush1.xpose.msra.mxu0 0.0
  %1877 = vmatprep.subr.mxu0 0.0
  %1878 = vmatpush1.xpose.msra.mxu0 0.0
  %1879 = vmatprep.subr.mxu0 0.0
  %1880 = vmatpush1.xpose.msra.mxu0 0.0
  %1881 = vmatprep.subr.mxu0 0.0
  %1882 = vmatpush1.xpose.msra.mxu0 0.0
  %1883 = vmatprep.subr.mxu0 0.0
  %1884 = vmatpush1.xpose.msra.mxu0 0.0
  %1885 = vmatprep.subr.mxu0 0.0
  %1886 = vmatpush1.xpose.msra.mxu0 0.0
  %1887 = vmatprep.subr.mxu0 0.0
  %1888 = vmatpush1.xpose.msra.mxu0 0.0
  %1889 = vmatprep.subr.mxu0 0.0
  %1890 = vmatpush1.xpose.msra.mxu0 0.0
  %1891 = vmatprep.subr.mxu0 0.0
  %1892 = vmatpush1.xpose.msra.mxu0 0.0
  %1893 = vmatprep.subr.mxu0 0.0
  %1894 = vmatpush1.xpose.msra.mxu0 0.0
  %1895 = vmatprep.subr.mxu0 0.0
  %1896 = vmatpush1.xpose.msra.mxu0 0.0
  %1897 = vmatprep.subr.mxu0 0.0
  %1898 = vmatpush1.xpose.msra.mxu0 0.0
  %1899 = vmatprep.subr.mxu0 0.0
  %1900 = vmatpush1.xpose.msra.mxu0 %v1869
  %1901 = vmatprep.subr.mxu0 0.0
  %1902 = vmatpush1.xpose.msra.mxu0 %v1866
  %1903 = vmatprep.subr.mxu0 0.0
  %1904 = vmatpush2.xpose.msra.mxu0 0.0
  %1905 = vmatprep.subr.mxu0 0.0
  %1906 = vmatpush2.xpose.msra.mxu0 0.0
  %1907 = vmatprep.subr.mxu0 0.0
  %1908 = vmatpush2.xpose.msra.mxu0 0.0
  %1909 = vmatprep.subr.mxu0 0.0
  %1910 = vmatpush2.xpose.msra.mxu0 0.0
  %1911 = vmatprep.subr.mxu0 0.0
  %1912 = vmatpush2.xpose.msra.mxu0 0.0
  %1913 = vmatprep.subr.mxu0 0.0
  %1914 = vmatpush2.xpose.msra.mxu0 0.0
  %1915 = vmatprep.subr.mxu0 0.0
  %1916 = vmatpush2.xpose.msra.mxu0 0.0
  %1917 = vmatprep.subr.mxu0 0.0
  %1918 = vmatpush2.xpose.msra.mxu0 0.0
  %1919 = vmatprep.subr.mxu0 0.0
  %1920 = vmatpush2.xpose.msra.mxu0 0.0
  %1921 = vmatprep.subr.mxu0 0.0
  %1922 = vmatpush2.xpose.msra.mxu0 0.0
  %1923 = vmatprep.subr.mxu0 0.0
  %1924 = vmatpush2.xpose.msra.mxu0 0.0
  %1925 = vmatprep.subr.mxu0 0.0
  %1926 = vmatpush2.xpose.msra.mxu0 0.0
  %1927 = vmatprep.subr.mxu0 0.0
  %1928 = vmatpush2.xpose.msra.mxu0 0.0
  %1929 = vmatprep.subr.mxu0 0.0
  %1930 = vmatpush2.xpose.msra.mxu0 0.0
  %1931 = vmatprep.subr.mxu0 0.0
  %1932 = vmatpush2.xpose.msra.mxu0 0.0
  %1933 = vmatprep.subr.mxu0 0.0
  %1934 = vmatpush2.xpose.msra.mxu0 0.0
  %1935 = vmatprep.mubr.f32.mxu0 0.0
  %1936 = vmatmul.mubr.f32.gmra.mxu0 %v1860
  %v1937 = vpop.f32.mrf.mxu0
  %v1938 = vadd.f32 %v22, %v1937
  %v1939 = vpop.f32.mrf.mxu0
  %1940 = vmatprep.mubr.f32.mxu0 0.0
  %1941 = vmatmul.mubr.f32.gmra.mxu0 %v1863
  %v1942 = vpop.f32.mrf.mxu0
  %v1943 = vadd.f32 %v23, %v1942
  %v1944 = vpop.f32.mrf.mxu0
  %1945 = vdwg.mxu0
  %v1946 = vsel %vm371, %v1938, -inf
  %1947 = vmax.xlane.f32.xlu0 %v1946
  %v1948 = vpop.xlane.xlu0 %1947
  %v1949 = vsel %vm371, %v1943, -inf
  %1950 = vmax.xlane.f32.xlu0 %v1949
  %v1951 = vpop.xlane.xlu0 %1950
  %v1952 = vsub.f32 %v1938, %v1948
  %v1953 = vsub.f32 %v1943, %v1951
  %v1954 = vmul.f32 %v1952, 1.442695
  %v1955 = vpow.pop %v1954
  %v1956 = vmul.f32 %v1953, 1.442695
  %v1957 = vpow.pop %v1956
  %v1958 = vsel %vm371, %v1955, 0.0
  %1959 = vadd.xlane.f32.xlu0 %v1958
  %v1960 = vpop.xlane.xlu0 %1959
  %v1961 = vsel %vm371, %v1957, 0.0
  %1962 = vadd.xlane.f32.xlu0 %v1961
  %v1963 = vpop.xlane.xlu0 %1962
  %v1964 = vrcp.pop %v1960
  %v1965 = vmul.f32 %v1955, %v1964
  %v1966 = vrcp.pop %v1963
  %v1967 = vmul.f32 %v1957, %v1966
  %v1969 = vsel %vm371, %v1965, 0
  %v1972 = vsel %vm371, %v1967, 0
  %1974 = vmatprep.subr.mxu0 0.0
  %1975 = vmatpush1.msra.mxu0 0.0
  %1976 = vmatprep.subr.mxu0 0.0
  %1977 = vmatpush1.msra.mxu0 0.0
  %1978 = vmatprep.subr.mxu0 0.0
  %1979 = vmatpush1.msra.mxu0 0.0
  %1980 = vmatprep.subr.mxu0 0.0
  %1981 = vmatpush1.msra.mxu0 0.0
  %1982 = vmatprep.subr.mxu0 0.0
  %1983 = vmatpush1.msra.mxu0 0.0
  %1984 = vmatprep.subr.mxu0 0.0
  %1985 = vmatpush1.msra.mxu0 0.0
  %1986 = vmatprep.subr.mxu0 0.0
  %1987 = vmatpush1.msra.mxu0 0.0
  %1988 = vmatprep.subr.mxu0 0.0
  %1989 = vmatpush1.msra.mxu0 0.0
  %1990 = vmatprep.subr.mxu0 0.0
  %1991 = vmatpush1.msra.mxu0 0.0
  %1992 = vmatprep.subr.mxu0 0.0
  %1993 = vmatpush1.msra.mxu0 0.0
  %1994 = vmatprep.subr.mxu0 0.0
  %1995 = vmatpush1.msra.mxu0 0.0
  %1996 = vmatprep.subr.mxu0 0.0
  %1997 = vmatpush1.msra.mxu0 0.0
  %1998 = vmatprep.subr.mxu0 0.0
  %1999 = vmatpush1.msra.mxu0 0.0
  %2000 = vmatprep.subr.mxu0 0.0
  %2001 = vmatpush1.msra.mxu0 0.0
  %2002 = vmatprep.subr.mxu0 0.0
  %2003 = vmatpush1.msra.mxu0 %v1856
  %2004 = vmatprep.subr.mxu0 0.0
  %2005 = vmatpush1.msra.mxu0 %v1851
  %2006 = vmatprep.subr.mxu0 0.0
  %2007 = vmatpush2.msra.mxu0 0.0
  %2008 = vmatprep.subr.mxu0 0.0
  %2009 = vmatpush2.msra.mxu0 0.0
  %2010 = vmatprep.subr.mxu0 0.0
  %2011 = vmatpush2.msra.mxu0 0.0
  %2012 = vmatprep.subr.mxu0 0.0
  %2013 = vmatpush2.msra.mxu0 0.0
  %2014 = vmatprep.subr.mxu0 0.0
  %2015 = vmatpush2.msra.mxu0 0.0
  %2016 = vmatprep.subr.mxu0 0.0
  %2017 = vmatpush2.msra.mxu0 0.0
  %2018 = vmatprep.subr.mxu0 0.0
  %2019 = vmatpush2.msra.mxu0 0.0
  %2020 = vmatprep.subr.mxu0 0.0
  %2021 = vmatpush2.msra.mxu0 0.0
  %2022 = vmatprep.subr.mxu0 0.0
  %2023 = vmatpush2.msra.mxu0 0.0
  %2024 = vmatprep.subr.mxu0 0.0
  %2025 = vmatpush2.msra.mxu0 0.0
  %2026 = vmatprep.subr.mxu0 0.0
  %2027 = vmatpush2.msra.mxu0 0.0
  %2028 = vmatprep.subr.mxu0 0.0
  %2029 = vmatpush2.msra.mxu0 0.0
  %2030 = vmatprep.subr.mxu0 0.0
  %2031 = vmatpush2.msra.mxu0 0.0
  %2032 = vmatprep.subr.mxu0 0.0
  %2033 = vmatpush2.msra.mxu0 0.0
  %2034 = vmatprep.subr.mxu0 0.0
  %2035 = vmatpush2.msra.mxu0 0.0
  %2036 = vmatprep.subr.mxu0 0.0
  %2037 = vmatpush2.msra.mxu0 0.0
  %2038 = vmatprep.mubr.f32.mxu0 0.0
  %2039 = vmatmul.mubr.f32.gmra.mxu0 %v1969
  %v2040 = vpop.f32.mrf.mxu0
  %v2041 = vadd.f32 0.0, %v2040
  %v2042 = vpop.f32.mrf.mxu0
  %2043 = vmatprep.mubr.f32.mxu0 0.0
  %2044 = vmatmul.mubr.f32.gmra.mxu0 %v1972
  %v2045 = vpop.f32.mrf.mxu0
  %v2046 = vadd.f32 0.0, %v2045
  %v2047 = vpop.f32.mrf.mxu0
  %2048 = vdwg.mxu0
  %v2049 = vld [vmem:[%s3 + $0x18] sm:$0xff]
  %v2051 = vsel %vm283, %v2041, 0
  %v2054 = vsel %vm283, %v2046, 0
  %2056 = vmatprep.subr.mxu0 0.0
  %2057 = vmatpush1.msra.mxu0 0.0
  %2058 = vmatprep.subr.mxu0 0.0
  %2059 = vmatpush1.msra.mxu0 0.0
  %2060 = vmatprep.subr.mxu0 0.0
  %2061 = vmatpush1.msra.mxu0 0.0
  %2062 = vmatprep.subr.mxu0 0.0
  %2063 = vmatpush1.msra.mxu0 0.0
  %2064 = vmatprep.subr.mxu0 0.0
  %2065 = vmatpush1.msra.mxu0 0.0
  %2066 = vmatprep.subr.mxu0 0.0
  %2067 = vmatpush1.msra.mxu0 0.0
  %2068 = vmatprep.subr.mxu0 0.0
  %2069 = vmatpush1.msra.mxu0 0.0
  %2070 = vmatprep.subr.mxu0 0.0
  %2071 = vmatpush1.msra.mxu0 0.0
  %2072 = vmatprep.subr.mxu0 0.0
  %2073 = vmatpush1.msra.mxu0 0.0
  %2074 = vmatprep.subr.mxu0 0.0
  %2075 = vmatpush1.msra.mxu0 0.0
  %2076 = vmatprep.subr.mxu0 0.0
  %2077 = vmatpush1.msra.mxu0 0.0
  %2078 = vmatprep.subr.mxu0 0.0
  %2079 = vmatpush1.msra.mxu0 0.0
  %2080 = vmatprep.subr.mxu0 0.0
  %2081 = vmatpush1.msra.mxu0 0.0
  %2082 = vmatprep.subr.mxu0 0.0
  %2083 = vmatpush1.msra.mxu0 0.0
  %2084 = vmatprep.subr.mxu0 0.0
  %2085 = vmatpush1.msra.mxu0 0.0
  %2086 = vmatprep.subr.mxu0 0.0
  %2087 = vmatpush1.msra.mxu0 %v2049
  %2088 = vmatprep.subr.mxu0 0.0
  %2089 = vmatpush2.msra.mxu0 0.0
  %2090 = vmatprep.subr.mxu0 0.0
  %2091 = vmatpush2.msra.mxu0 0.0
  %2092 = vmatprep.subr.mxu0 0.0
  %2093 = vmatpush2.msra.mxu0 0.0
  %2094 = vmatprep.subr.mxu0 0.0
  %2095 = vmatpush2.msra.mxu0 0.0
  %2096 = vmatprep.subr.mxu0 0.0
  %2097 = vmatpush2.msra.mxu0 0.0
  %2098 = vmatprep.subr.mxu0 0.0
  %2099 = vmatpush2.msra.mxu0 0.0
  %2100 = vmatprep.subr.mxu0 0.0
  %2101 = vmatpush2.msra.mxu0 0.0
  %2102 = vmatprep.subr.mxu0 0.0
  %2103 = vmatpush2.msra.mxu0 0.0
  %2104 = vmatprep.subr.mxu0 0.0
  %2105 = vmatpush2.msra.mxu0 0.0
  %2106 = vmatprep.subr.mxu0 0.0
  %2107 = vmatpush2.msra.mxu0 0.0
  %2108 = vmatprep.subr.mxu0 0.0
  %2109 = vmatpush2.msra.mxu0 0.0
  %2110 = vmatprep.subr.mxu0 0.0
  %2111 = vmatpush2.msra.mxu0 0.0
  %2112 = vmatprep.subr.mxu0 0.0
  %2113 = vmatpush2.msra.mxu0 0.0
  %2114 = vmatprep.subr.mxu0 0.0
  %2115 = vmatpush2.msra.mxu0 0.0
  %2116 = vmatprep.subr.mxu0 0.0
  %2117 = vmatpush2.msra.mxu0 0.0
  %2118 = vmatprep.subr.mxu0 0.0
  %2119 = vmatpush2.msra.mxu0 0.0
  %2120 = vmatprep.mubr.f32.mxu0 0.0
  %2121 = vmatmul.mubr.f32.gmra.mxu0 %v2051
  %v2122 = vpop.f32.mrf.mxu0
  %v2123 = vadd.f32 0.0, %v2122
  %v2124 = vpop.f32.mrf.mxu0
  %2125 = vmatprep.mubr.f32.mxu0 0.0
  %2126 = vmatmul.mubr.f32.gmra.mxu0 %v2054
  %v2127 = vpop.f32.mrf.mxu0
  %v2128 = vadd.f32 0.0, %v2127
  %v2129 = vpop.f32.mrf.mxu0
  %2130 = vdwg.mxu0
  %v2131 = vadd.f32 %v1605, %v2123
  %v2132 = vadd.f32 %v1606, %v2128
  %v2133 = vld [vmem:[%s4] sm:$0x1]
  %v2134 = vld [vmem:[%s4 + $0x1] sm:$0x1]
  %v2135 = vld [vmem:[%s4 + $0x2] sm:$0x1]
  %v2136 = vld [vmem:[%s4 + $0x3] sm:$0x1]
  %v2137 = vld [vmem:[%s4 + $0x4] sm:$0x1]
  %v2138 = vld [vmem:[%s4 + $0x5] sm:$0x1]
  %v2139 = vld [vmem:[%s4 + $0x6] sm:$0x1]
  %v2140 = vadd.f32 %v20, %v2131
  %v2141 = vadd.f32 %v21, %v2132
  %v2142 = vlaneseq
  %v2143 = vshrl.u32 %v2142, 7
  %v2144 = vsub.s32 0, %v2143
  %v2145 = vrot.slane %v2133, %v2144
  %v2146 = vadd.f32 %v2140, %v2145
  %v2147 = vadd.f32 %v2141, %v2145
  %vm2148 = vcmask 261120
  %v2149 = vsel %vm2148, %v2146, 0.0
  %2150 = vadd.xlane.f32.xlu0 %v2149
  %v2151 = vpop.xlane.xlu0 %2150
  %v2152 = vsel %vm2148, %v2147, 0.0
  %2153 = vadd.xlane.f32.xlu0 %v2152
  %v2154 = vpop.xlane.xlu0 %2153
  %v2155 = vrcp.pop 32.0
  %v2156 = vmul.f32 %v2151, %v2155
  %v2157 = vmul.f32 %v2154, %v2155
  %v2158 = vsub.f32 %v2146, %v2156
  %v2159 = vsub.f32 %v2147, %v2157
  %v2160 = vmul.f32 %v2158, %v2158
  %v2161 = vmul.f32 %v2159, %v2159
  %v2162 = vsel %vm2148, %v2160, 0.0
  %2163 = vadd.xlane.f32.xlu0 %v2162
  %v2164 = vpop.xlane.xlu0 %2163
  %v2165 = vsel %vm2148, %v2161, 0.0
  %2166 = vadd.xlane.f32.xlu0 %v2165
  %v2167 = vpop.xlane.xlu0 %2166
  %v2168 = vmul.f32 %v2164, %v2155
  %v2169 = vmul.f32 %v2167, %v2155
  %v2170 = vadd.f32 %v2168, 1e-05
  %v2171 = vadd.f32 %v2169, 1e-05
  %v2172 = vrsqrt.pop %v2170
  %v2173 = vrsqrt.pop %v2171
  %v2174 = vmul.f32 %v2158, %v2172
  %v2175 = vmul.f32 %v2159, %v2173
  %v2176 = vlaneseq
  %v2177 = vshrl.u32 %v2176, 7
  %v2178 = vsub.s32 0, %v2177
  %v2179 = vrot.slane %v2134, %v2178
  %v2180 = vmul.f32 %v2174, %v2179
  %v2181 = vmul.f32 %v2175, %v2179
  %v2182 = vlaneseq
  %v2183 = vshrl.u32 %v2182, 7
  %v2184 = vsub.s32 0, %v2183
  %v2185 = vrot.slane %v2135, %v2184
  %v2186 = vadd.f32 %v2180, %v2185
  %v2187 = vadd.f32 %v2181, %v2185
  %v2188 = vld [vmem:[%s3 + $0x20] sm:$0xff]
  %v2189 = vld [vmem:[%s3 + $0x28] sm:$0xff]
  %v2190 = vld [vmem:[%s3 + $0x30] sm:$0xff]
  %v2191 = vld [vmem:[%s3 + $0x38] sm:$0xff]
  %v2192 = vld [vmem:[%s3 + $0x40] sm:$0xff]
  %v2193 = vld [vmem:[%s3 + $0x48] sm:$0xff]
  %v2194 = vld [vmem:[%s3 + $0x50] sm:$0xff]
  %v2195 = vld [vmem:[%s3 + $0x58] sm:$0xff]
  %v2196 = vld [vmem:[%s3 + $0x60] sm:$0xff]
  %v2197 = vld [vmem:[%s3 + $0x68] sm:$0xff]
  %v2198 = vld [vmem:[%s3 + $0x70] sm:$0xff]
  %v2199 = vld [vmem:[%s3 + $0x78] sm:$0xff]
  %v2200 = vlaneseq
  %v2201 = vshrl.u32 %v2200, 7
  %v2202 = vsub.s32 0, %v2201
  %v2203 = vrot.slane %v2136, %v2202
  %v2205 = vsel %vm2148, %v2186, 0
  %v2208 = vsel %vm2148, %v2187, 0
  %2210 = vmatprep.subr.mxu0 0.0
  %2211 = vmatpush1.msra.mxu0 0.0
  %2212 = vmatprep.subr.mxu0 0.0
  %2213 = vmatpush1.msra.mxu0 0.0
  %2214 = vmatprep.subr.mxu0 0.0
  %2215 = vmatpush1.msra.mxu0 0.0
  %2216 = vmatprep.subr.mxu0 0.0
  %2217 = vmatpush1.msra.mxu0 0.0
  %2218 = vmatprep.subr.mxu0 0.0
  %2219 = vmatpush1.msra.mxu0 0.0
  %2220 = vmatprep.subr.mxu0 0.0
  %2221 = vmatpush1.msra.mxu0 0.0
  %2222 = vmatprep.subr.mxu0 0.0
  %2223 = vmatpush1.msra.mxu0 0.0
  %2224 = vmatprep.subr.mxu0 0.0
  %2225 = vmatpush1.msra.mxu0 0.0
  %2226 = vmatprep.subr.mxu0 0.0
  %2227 = vmatpush1.msra.mxu0 0.0
  %2228 = vmatprep.subr.mxu0 0.0
  %2229 = vmatpush1.msra.mxu0 0.0
  %2230 = vmatprep.subr.mxu0 0.0
  %2231 = vmatpush1.msra.mxu0 0.0
  %2232 = vmatprep.subr.mxu0 0.0
  %2233 = vmatpush1.msra.mxu0 0.0
  %2234 = vmatprep.subr.mxu0 0.0
  %2235 = vmatpush1.msra.mxu0 %v2191
  %2236 = vmatprep.subr.mxu0 0.0
  %2237 = vmatpush1.msra.mxu0 %v2190
  %2238 = vmatprep.subr.mxu0 0.0
  %2239 = vmatpush1.msra.mxu0 %v2189
  %2240 = vmatprep.subr.mxu0 0.0
  %2241 = vmatpush1.msra.mxu0 %v2188
  %2242 = vmatprep.subr.mxu0 0.0
  %2243 = vmatpush2.msra.mxu0 0.0
  %2244 = vmatprep.subr.mxu0 0.0
  %2245 = vmatpush2.msra.mxu0 0.0
  %2246 = vmatprep.subr.mxu0 0.0
  %2247 = vmatpush2.msra.mxu0 0.0
  %2248 = vmatprep.subr.mxu0 0.0
  %2249 = vmatpush2.msra.mxu0 0.0
  %2250 = vmatprep.subr.mxu0 0.0
  %2251 = vmatpush2.msra.mxu0 0.0
  %2252 = vmatprep.subr.mxu0 0.0
  %2253 = vmatpush2.msra.mxu0 0.0
  %2254 = vmatprep.subr.mxu0 0.0
  %2255 = vmatpush2.msra.mxu0 0.0
  %2256 = vmatprep.subr.mxu0 0.0
  %2257 = vmatpush2.msra.mxu0 0.0
  %2258 = vmatprep.subr.mxu0 0.0
  %2259 = vmatpush2.msra.mxu0 0.0
  %2260 = vmatprep.subr.mxu0 0.0
  %2261 = vmatpush2.msra.mxu0 0.0
  %2262 = vmatprep.subr.mxu0 0.0
  %2263 = vmatpush2.msra.mxu0 0.0
  %2264 = vmatprep.subr.mxu0 0.0
  %2265 = vmatpush2.msra.mxu0 0.0
  %2266 = vmatprep.subr.mxu0 0.0
  %2267 = vmatpush2.msra.mxu0 0.0
  %2268 = vmatprep.subr.mxu0 0.0
  %2269 = vmatpush2.msra.mxu0 0.0
  %2270 = vmatprep.subr.mxu0 0.0
  %2271 = vmatpush2.msra.mxu0 0.0
  %2272 = vmatprep.subr.mxu0 0.0
  %2273 = vmatpush2.msra.mxu0 0.0
  %2274 = vmatprep.mubr.f32.mxu0 0.0
  %2275 = vmatmul.mubr.f32.gmra.mxu0 %v2205
  %v2276 = vpop.f32.mrf.mxu0
  %v2277 = vadd.f32 %v2203, %v2276
  %v2278 = vpop.f32.mrf.mxu0
  %2279 = vmatprep.mubr.f32.mxu0 0.0
  %2280 = vmatmul.mubr.f32.gmra.mxu0 %v2208
  %v2281 = vpop.f32.mrf.mxu0
  %v2282 = vadd.f32 %v2203, %v2281
  %v2283 = vpop.f32.mrf.mxu0
  %2284 = vdwg.mxu0
  %v2285 = vmax.f32 %v2277, 0.0
  %v2286 = vmax.f32 %v2282, 0.0
  %v2287 = vlaneseq
  %v2288 = vshrl.u32 %v2287, 7
  %v2289 = vsub.s32 0, %v2288
  %v2290 = vrot.slane %v2137, %v2289
  %vm2291 = vcmask 523264
  %v2293 = vsel %vm2291, %v2285, 0
  %v2296 = vsel %vm2291, %v2286, 0
  %2298 = vmatprep.subr.mxu0 0.0
  %2299 = vmatpush1.msra.mxu0 0.0
  %2300 = vmatprep.subr.mxu0 0.0
  %2301 = vmatpush1.msra.mxu0 0.0
  %2302 = vmatprep.subr.mxu0 0.0
  %2303 = vmatpush1.msra.mxu0 0.0
  %2304 = vmatprep.subr.mxu0 0.0
  %2305 = vmatpush1.msra.mxu0 0.0
  %2306 = vmatprep.subr.mxu0 0.0
  %2307 = vmatpush1.msra.mxu0 0.0
  %2308 = vmatprep.subr.mxu0 0.0
  %2309 = vmatpush1.msra.mxu0 0.0
  %2310 = vmatprep.subr.mxu0 0.0
  %2311 = vmatpush1.msra.mxu0 0.0
  %2312 = vmatprep.subr.mxu0 0.0
  %2313 = vmatpush1.msra.mxu0 0.0
  %2314 = vmatprep.subr.mxu0 0.0
  %2315 = vmatpush1.msra.mxu0 %v2199
  %2316 = vmatprep.subr.mxu0 0.0
  %2317 = vmatpush1.msra.mxu0 %v2198
  %2318 = vmatprep.subr.mxu0 0.0
  %2319 = vmatpush1.msra.mxu0 %v2197
  %2320 = vmatprep.subr.mxu0 0.0
  %2321 = vmatpush1.msra.mxu0 %v2196
  %2322 = vmatprep.subr.mxu0 0.0
  %2323 = vmatpush1.msra.mxu0 %v2195
  %2324 = vmatprep.subr.mxu0 0.0
  %2325 = vmatpush1.msra.mxu0 %v2194
  %2326 = vmatprep.subr.mxu0 0.0
  %2327 = vmatpush1.msra.mxu0 %v2193
  %2328 = vmatprep.subr.mxu0 0.0
  %2329 = vmatpush1.msra.mxu0 %v2192
  %2330 = vmatprep.subr.mxu0 0.0
  %2331 = vmatpush2.msra.mxu0 0.0
  %2332 = vmatprep.subr.mxu0 0.0
  %2333 = vmatpush2.msra.mxu0 0.0
  %2334 = vmatprep.subr.mxu0 0.0
  %2335 = vmatpush2.msra.mxu0 0.0
  %2336 = vmatprep.subr.mxu0 0.0
  %2337 = vmatpush2.msra.mxu0 0.0
  %2338 = vmatprep.subr.mxu0 0.0
  %2339 = vmatpush2.msra.mxu0 0.0
  %2340 = vmatprep.subr.mxu0 0.0
  %2341 = vmatpush2.msra.mxu0 0.0
  %2342 = vmatprep.subr.mxu0 0.0
  %2343 = vmatpush2.msra.mxu0 0.0
  %2344 = vmatprep.subr.mxu0 0.0
  %2345 = vmatpush2.msra.mxu0 0.0
  %2346 = vmatprep.subr.mxu0 0.0
  %2347 = vmatpush2.msra.mxu0 0.0
  %2348 = vmatprep.subr.mxu0 0.0
  %2349 = vmatpush2.msra.mxu0 0.0
  %2350 = vmatprep.subr.mxu0 0.0
  %2351 = vmatpush2.msra.mxu0 0.0
  %2352 = vmatprep.subr.mxu0 0.0
  %2353 = vmatpush2.msra.mxu0 0.0
  %2354 = vmatprep.subr.mxu0 0.0
  %2355 = vmatpush2.msra.mxu0 0.0
  %2356 = vmatprep.subr.mxu0 0.0
  %2357 = vmatpush2.msra.mxu0 0.0
  %2358 = vmatprep.subr.mxu0 0.0
  %2359 = vmatpush2.msra.mxu0 0.0
  %2360 = vmatprep.subr.mxu0 0.0
  %2361 = vmatpush2.msra.mxu0 0.0
  %2362 = vmatprep.mubr.f32.mxu0 0.0
  %2363 = vmatmul.mubr.f32.gmra.mxu0 %v2293
  %v2364 = vpop.f32.mrf.mxu0
  %v2365 = vadd.f32 %v2290, %v2364
  %v2366 = vpop.f32.mrf.mxu0
  %2367 = vmatprep.mubr.f32.mxu0 0.0
  %2368 = vmatmul.mubr.f32.gmra.mxu0 %v2296
  %v2369 = vpop.f32.mrf.mxu0
  %v2370 = vadd.f32 %v2290, %v2369
  %v2371 = vpop.f32.mrf.mxu0
  %2372 = vdwg.mxu0
  %v2373 = vadd.f32 %v2186, %v2365
  %v2374 = vadd.f32 %v2187, %v2370
  %v2375 = vsel %vm2148, %v2373, 0.0
  %2376 = vadd.xlane.f32.xlu0 %v2375
  %v2377 = vpop.xlane.xlu0 %2376
  %v2378 = vsel %vm2148, %v2374, 0.0
  %2379 = vadd.xlane.f32.xlu0 %v2378
  %v2380 = vpop.xlane.xlu0 %2379
  %v2381 = vmul.f32 %v2377, %v2155
  %v2382 = vmul.f32 %v2380, %v2155
  %v2383 = vsub.f32 %v2373, %v2381
  %v2384 = vsub.f32 %v2374, %v2382
  %v2385 = vmul.f32 %v2383, %v2383
  %v2386 = vmul.f32 %v2384, %v2384
  %v2387 = vsel %vm2148, %v2385, 0.0
  %2388 = vadd.xlane.f32.xlu0 %v2387
  %v2389 = vpop.xlane.xlu0 %2388
  %v2390 = vsel %vm2148, %v2386, 0.0
  %2391 = vadd.xlane.f32.xlu0 %v2390
  %v2392 = vpop.xlane.xlu0 %2391
  %v2393 = vmul.f32 %v2389, %v2155
  %v2394 = vmul.f32 %v2392, %v2155
  %v2395 = vadd.f32 %v2393, 1e-05
  %v2396 = vadd.f32 %v2394, 1e-05
  %v2397 = vrsqrt.pop %v2395
  %v2398 = vrsqrt.pop %v2396
  %v2399 = vmul.f32 %v2383, %v2397
  %v2400 = vmul.f32 %v2384, %v2398
  %v2401 = vlaneseq
  %v2402 = vshrl.u32 %v2401, 7
  %v2403 = vsub.s32 0, %v2402
  %v2404 = vrot.slane %v2138, %v2403
  %v2405 = vmul.f32 %v2399, %v2404
  %v2406 = vmul.f32 %v2400, %v2404
  %v2407 = vlaneseq
  %v2408 = vshrl.u32 %v2407, 7
  %v2409 = vsub.s32 0, %v2408
  %v2410 = vrot.slane %v2139, %v2409
  %v2411 = vadd.f32 %v2405, %v2410
  %v2412 = vadd.f32 %v2406, %v2410
  %2413 = vst.msk [vmem:[%s5] sm:$0xff] %vm2148, %v2411
  %2414 = vst.msk [vmem:[%s5 + $0x8] sm:$0xff] %vm2148, %v2412
  // Predicated region
  $region22: #{transformer_encoder_layer.1} parent=0 // pred_check
    _
  $region23: #{transformer_encoder_layer.1} parent=0 // pred_check_branch
    %2416 = sbr.rel (0) target = $region25
  $region24: #{transformer_encoder_layer.1} parent=0 // pred_region
    _
  $region25: #{transformer_encoder_layer.1} parent=0 // pred_fallthru
    _
  // Predicated region
  $region26: #{transformer_encoder_layer.1} parent=0 // pred_check
    _
  $region27: #{transformer_encoder_layer.1} parent=0 // pred_check_branch
    %2418 = sbr.rel (0) target = $region29
  $region28: #{transformer_encoder_layer.1} parent=0 // pred_region
    _
  $region29: #{transformer_encoder_layer.1} parent=0 // pred_fallthru
    _

</llo_original>
